<compile_context>
chip_gen: v5e
topology: v5e:2x2
jax: 0.10.0
libtpu: 0.0.40
codegen_flags: <defaults>
</compile_context>

<pallas_src>
import functools
import math

import jax
import jax.numpy as jnp
from jax.experimental import pallas as pl
from jax.experimental.pallas import tpu as pltpu

_MASK_VALUE = -1e30  # large-negative (finite) fill for padded key columns


def _flash_attn_kernel(q_ref, k_ref, v_ref, o_ref,
                       m_ref, l_ref, acc_ref, vaug_ref, *,
                       scale, hc, e_dim, d_dim, s_total, s_block,
                       mask_s, fuse_rowsum, p_dtype):
    """One grid step over a head group of `hc` heads packed along lanes.

    q_ref: (Lt, hc*E)   k_ref: (St, hc*E)   v_ref: (St, hc*D)   o_ref: (Lt, hc*D)
    m_ref/l_ref: (hc, Lt, 1) f32 scratch;  acc_ref: (hc, Lt, D) f32 scratch
    vaug_ref:  (St, D+1) scratch holding [V_h | 1] for the fused row-sum.
    """
    si = pl.program_id(3)

    @pl.when(si == 0)
    def _():
        m_ref[...] = jnp.full(m_ref.shape, -jnp.inf, dtype=jnp.float32)
        l_ref[...] = jnp.zeros(l_ref.shape, dtype=jnp.float32)
        acc_ref[...] = jnp.zeros(acc_ref.shape, dtype=jnp.float32)

    # Fold the softmax scale into Q (Lt*hc*E multiplies instead of Lt*St).
    q_all = q_ref[...] * scale                                # operand dtype

    if mask_s:  # static flag: only when S was padded up to a multiple of St.
        col = si * s_block + jax.lax.broadcasted_iota(
            jnp.int32, (q_ref.shape[0], s_block), 1)
        col_valid = col < s_total

    for h in range(hc):               # static unroll over the packed heads
        q_h = q_all[:, h * e_dim:(h + 1) * e_dim]             # (Lt, E)
        k_h = k_ref[:, h * e_dim:(h + 1) * e_dim]             # (St, E)
        # scores[l, s] = sum_e q[l, e] * k[s, e]  (no materialized K^T)
        scores = jax.lax.dot_general(
            q_h, k_h, dimension_numbers=(((1,), (1,)), ((), ())),
            preferred_element_type=jnp.float32)               # (Lt, St) f32
        if mask_s:
            scores = jnp.where(col_valid, scores, _MASK_VALUE)

        # Online (streaming) softmax over the key axis; state kept in f32.
        m_prev = m_ref[h]                                     # (Lt, 1)
        m_new = jnp.maximum(m_prev, jnp.max(scores, axis=-1, keepdims=True))
        alpha = jnp.exp(m_prev - m_new)                       # (Lt, 1) f32
        # exp on the operand dtype: bf16 keeps the (likely binding) EUP and the
        # PV matmul operand cheap on v6e/v7x; on v5e this lowers back to f32.
        p = jnp.exp((scores - m_new).astype(p_dtype))         # (Lt, St)

        v_h = v_ref[:, h * d_dim:(h + 1) * d_dim]             # (St, D)
        if fuse_rowsum:
            # [acc | l] = p @ [V | 1]: the ones column rides in free MXU lanes
            # (D % 128 != 0), removing the XLU row-sum over (Lt, St).
            vaug_ref[:, :d_dim] = v_h
            vaug_ref[:, d_dim:d_dim + 1] = jnp.ones(
                (v_h.shape[0], 1), dtype=vaug_ref.dtype)
            pv = jax.lax.dot_general(
                p, vaug_ref[...], dimension_numbers=(((1,), (0,)), ((), ())),
                preferred_element_type=jnp.float32)           # (Lt, D+1) f32
            acc_upd = pv[:, :d_dim]
            l_upd = pv[:, d_dim:d_dim + 1]
        else:
            acc_upd = jax.lax.dot_general(
                p, v_h, dimension_numbers=(((1,), (0,)), ((), ())),
                preferred_element_type=jnp.float32)           # (Lt, D) f32
            l_upd = jnp.sum(p, axis=-1, keepdims=True, dtype=jnp.float32)

        m_ref[h] = m_new
        l_ref[h] = alpha * l_ref[h] + l_upd
        acc_ref[h] = alpha * acc_ref[h] + acc_upd

    # TODO(synk): attention dropout (p=0.1) omitted — inference semantics
    # (nn.Dropout is identity in eval mode).

    @pl.when(si == pl.num_programs(3) - 1)
    def _():
        for h in range(hc):
            inv = pl.reciprocal(l_ref[h], approx=True)        # EUP slot
            # Lane-dense store: heads packed along o_ref's last dim map
            # directly onto the native (B, L, H, D) output layout.
            o_ref[:, h * d_dim:(h + 1) * d_dim] = (
                acc_ref[h] * inv).astype(o_ref.dtype)


# ------------------------------ wrapper glue ------------------------------

def _cdiv(a, b):
    return -(-a // b)


def _round_up(x, m):
    return _cdiv(x, m) * m


def _r128(x):
    return _round_up(x, 128)


def _pick_head_group(h, e, d):
    """Smallest head group whose packed lane widths are 128-aligned (or full).

    Small hc keeps VMEM usage low (important on v7x's 64 MiB) while the lane
    constraint still yields >=128-wide, unmasked blocks."""
    for hc in range(1, h + 1):
        if h % hc == 0 and (hc * e) % 128 == 0 and (hc * d) % 128 == 0:
            return hc
    return h  # full-H blocks are always legal ("equal to the full dim")


def _vmem_limit_bytes():
    """min(3/4 of physical VMEM, 96 MiB): ~96 MiB on v5e/v6e, ~48 MiB on v7x."""
    phys = 64 * 1024 * 1024
    try:
        info = pltpu.get_tpu_info()
        phys = int(getattr(info, "vmem_capacity_bytes", phys)) or phys
    except Exception:
        pass
    return min(phys * 3 // 4, 96 * 1024 * 1024)


def _vmem_estimate(lt, st, hc, e, d, in_bytes, out_bytes, p_bytes):
    """Rough VMEM bytes for one grid step: double-buffered blocks, persistent
    scratch, and per-head scores/p intermediates (with slack)."""
    q = 2 * lt * _r128(hc * e) * in_bytes
    k = 2 * st * _r128(hc * e) * in_bytes
    v = 2 * st * _r128(hc * d) * in_bytes
    o = 2 * lt * _r128(hc * d) * out_bytes
    scratch = (hc * lt * (2 * 128 + _r128(d)) * 4
               + st * _r128(d + 1) * in_bytes)
    inter = 2 * lt * _r128(st) * (4 + p_bytes)
    return q + k + v + o + scratch + inter


def _choose_tiles(b, l, s, hc, h, e, d, in_bytes, out_bytes, p_bytes,
                  vmem_budget, block_l, block_s):
    def fits(lt, st):
        return _vmem_estimate(lt, st, hc, e, d, in_bytes, out_bytes,
                              p_bytes) <= vmem_budget

    # L tile target.
    lt = min(block_l if block_l is not None else 512, _round_up(l, 8))
    lt = max(8, _round_up(lt, 8))

    # S tile: keep the whole K/V slab resident across L tiles when it fits.
    s_full = _round_up(s, 8)
    if block_s is not None:
        st = max(8, _round_up(min(block_s, s_full), 8))
    elif fits(lt, s_full):
        st = s_full
    else:
        st = min(512, s_full)

    # Shrink until the estimate fits (L tile is the main roofline lever, so
    # give up S first, L only as a last resort).
    while not fits(lt, st) and st > 128:
        st = max(128, _round_up(st // 2, 8))
    while not fits(lt, st) and lt > 8:
        lt = max(8, _round_up(lt // 2, 8))
    while not fits(lt, st) and st > 8:
        st = max(8, _round_up(st // 2, 8))

    # If K/V are streamed (not resident), spend leftover VMEM on a larger L
    # tile: K/V HBM traffic scales with the number of L tiles.
    if block_l is None and st < s_full:
        while lt < min(_round_up(l, 8), 2048):
            nxt = min(_round_up(lt * 2, 8), _round_up(l, 8))
            if nxt == lt or not fits(nxt, st):
                break
            lt = nxt

    # Balance tiles against the actual extents (avoid a huge padded tail).
    n_l = max(1, _cdiv(l, lt))
    lt = _round_up(_cdiv(l, n_l), 8)
    n_s = max(1, _cdiv(s, st))
    st = _round_up(_cdiv(s, n_s), 8)

    # Keep >= 2 parallel grid steps so both v7x TensorCores get work.
    if b * (h // hc) * n_l < 2 and l > 8:
        n_l = 2
        lt = _round_up(_cdiv(l, n_l), 8)

    return lt, n_l, st, n_s


def full_attention(queries, keys, values, scale=None, *,
                   compute_dtype=jnp.bfloat16, block_l=None, block_s=None,
                   vmem_limit_bytes=None):
    """Pallas-TPU FullAttention forward in the native PyTorch layout.

    queries: (B, L, H, E), keys: (B, S, H, E), values: (B, S, H, D).
    Returns (B, L, H, D) in the dtype of `queries` (no transposes anywhere).

    compute_dtype: MXU operand dtype (default bfloat16; None keeps the input
    dtype).  Accumulation / softmax state is always float32.
    """
    B, L, H, E = queries.shape
    Bk, S, Hk, Ek = keys.shape
    Bv, Sv, Hv, D = values.shape
    assert (B, H, E) == (Bk, Hk, Ek) and (Bk, S, Hk) == (Bv, Sv, Hv)
    out_dtype = queries.dtype
    scale = float(scale) if scale is not None else 1.0 / math.sqrt(E)

    # bf16 operands: halves the Q/K/V HBM + DMA streams and hits the
    # bf16-native MXU on every generation.
    # TODO(synk): in the full model, keep the projections in bf16 upstream so
    # this cast disappears entirely.
    op_dtype = (jnp.dtype(compute_dtype) if compute_dtype is not None
                else jnp.dtype(queries.dtype))
    q, k, v = (x.astype(op_dtype) for x in (queries, keys, values))

    in_bytes = op_dtype.itemsize
    out_bytes = jnp.dtype(out_dtype).itemsize

    hc = _pick_head_group(H, E, D)
    limit = (int(vmem_limit_bytes) if vmem_limit_bytes is not None
             else _vmem_limit_bytes())
    lt, n_l, st, n_s = _choose_tiles(B, L, S, hc, H, E, D, in_bytes, out_bytes,
                                     in_bytes, int(limit * 0.8),
                                     block_l, block_s)
    L_pad, S_pad = n_l * lt, n_s * st

    # Pad (never fall back to full-extent blocks for awkward lengths); padded
    # query rows are harmless and sliced off, padded key columns are masked.
    if L_pad != L:
        q = jnp.pad(q, ((0, 0), (0, L_pad - L), (0, 0), (0, 0)))
    if S_pad != S:
        k = jnp.pad(k, ((0, 0), (0, S_pad - S), (0, 0), (0, 0)))
        v = jnp.pad(v, ((0, 0), (0, S_pad - S), (0, 0), (0, 0)))

    # Free views: merge (H, E)/(H, D) into one lane axis so a head group is a
    # lane-dense block — no layout-changing transposes anywhere.
    q3 = q.reshape(B, L_pad, H * E)
    k3 = k.reshape(B, S_pad, H * E)
    v3 = v.reshape(B, S_pad, H * D)

    mask_s = S_pad != S
    fuse_rowsum = (D % 128) != 0   # ones column must ride in free MXU lanes

    kernel = functools.partial(
        _flash_attn_kernel, scale=scale, hc=hc, e_dim=E, d_dim=D,
        s_total=S, s_block=st, mask_s=mask_s, fuse_rowsum=fuse_rowsum,
        p_dtype=op_dtype)

    grid = (B, H // hc, n_l, n_s)
    sq = pl.Squeezed()

    # TODO(synk): on v5e (lowest HBM BW), pipeline_mode=pl.Buffered(3) on the
    # K/V specs can further hide the streamed-K/V DMA when st < S.
    grid_spec = pltpu.PrefetchScalarGridSpec(
        num_scalar_prefetch=0,
        grid=grid,
        in_specs=[
            pl.BlockSpec((sq, lt, hc * E), lambda b, hg, li, si: (b, li, hg)),
            pl.BlockSpec((sq, st, hc * E), lambda b, hg, li, si: (b, si, hg)),
            pl.BlockSpec((sq, st, hc * D), lambda b, hg, li, si: (b, si, hg)),
        ],
        out_specs=pl.BlockSpec((sq, lt, hc * D),
                               lambda b, hg, li, si: (b, li, hg)),
        scratch_shapes=[
            pltpu.VMEM((hc, lt, 1), jnp.float32),   # running max
            pltpu.VMEM((hc, lt, 1), jnp.float32),   # running sum
            pltpu.VMEM((hc, lt, D), jnp.float32),   # f32 accumulator
            pltpu.VMEM((st, D + 1), op_dtype),      # [V_h | 1] fused row-sum
        ],
    )

    out3 = pl.pallas_call(
        kernel,
        out_shape=jax.ShapeDtypeStruct((B, L_pad, H * D), out_dtype),
        grid_spec=grid_spec,
        compiler_params=pltpu.CompilerParams(
            dimension_semantics=("parallel", "parallel", "parallel",
                                 "arbitrary"),
            vmem_limit_bytes=int(limit),
        ),
    )(q3, k3, v3)

    out = out3.reshape(B, L_pad, H, D)   # free view back to (B, L, H, D)
    if L_pad != L:
        out = out[:, :L]
    return out


def _reference(queries, keys, values, scale=None):
    B, L, H, E = queries.shape
    scale = scale if scale is not None else 1.0 / math.sqrt(E)
    scores = jnp.einsum('blhe,bshe->bhls', queries, keys)
    a = jax.nn.softmax(scale * scores, axis=-1)
    return jnp.einsum('bhls,bshd->blhd', a, values)


if __name__ == "__main__":
    key = jax.random.PRNGKey(0)
    B, L, S, H, E, D = 2, 16, 16, 4, 32, 32
    kq, kk, kv = jax.random.split(key, 3)
    queries = jax.random.normal(kq, (B, L, H, E), dtype=jnp.float32)
    keys = jax.random.normal(kk, (B, S, H, E), dtype=jnp.float32)
    values = jax.random.normal(kv, (B, S, H, D), dtype=jnp.float32)

    ref = _reference(queries, keys, values)

    # 1) f32 operands, auto tiling (whole-S resident K/V path).
    out_f32 = jax.block_until_ready(
        full_attention(queries, keys, values, compute_dtype=jnp.float32))
    assert out_f32.shape == (B, L, H, D)
    err = jnp.max(jnp.abs(out_f32 - ref))
    assert jnp.allclose(out_f32, ref, atol=5e-3, rtol=5e-3), f"f32 err={err}"

    # 2) f32, tiny tiles -> multi-block online softmax / streamed-K,V path.
    out_tiled = jax.block_until_ready(
        full_attention(queries, keys, values, compute_dtype=jnp.float32,
                       block_l=8, block_s=8))
    err = jnp.max(jnp.abs(out_tiled - ref))
    assert jnp.allclose(out_tiled, ref, atol=5e-3, rtol=5e-3), f"tiled err={err}"

    # 3) Default production path: bf16 MXU operands, f32 accumulation.
    out_bf16 = jax.block_until_ready(full_attention(queries, keys, values))
    assert out_bf16.dtype == queries.dtype
    ref_bf16 = _reference(
        *(x.astype(jnp.bfloat16).astype(jnp.float32)
          for x in (queries, keys, values)))
    err = jnp.max(jnp.abs(out_bf16 - ref_bf16))
    assert jnp.allclose(out_bf16, ref_bf16, atol=3e-2, rtol=3e-2), \
        f"bf16 err={err}"

    # 4) Ragged L/S -> padding + key-masking path.
    q_r, k_r, v_r = queries[:, :13], keys[:, :11], values[:, :11]
    ref_r = _reference(q_r, k_r, v_r)
    out_r = jax.block_until_ready(
        full_attention(q_r, k_r, v_r, compute_dtype=jnp.float32,
                       block_l=8, block_s=8))
    assert out_r.shape == (B, 13, H, D)
    err = jnp.max(jnp.abs(out_r - ref_r))
    assert jnp.allclose(out_r, ref_r, atol=5e-3, rtol=5e-3), f"ragged err={err}"

    print("KERNEL_OK")
</pallas_src>

<mosaic_0001>
module attributes {stable_mosaic.version = 11 : i64} {
  func.func @_flash_attn_kernel(%arg0: i32, %arg1: i32, %arg2: i32, %arg3: i32, %arg4: memref<1x16x128xf32, #tpu.memory_space<vmem>>, %arg5: memref<1x16x128xf32, #tpu.memory_space<vmem>>, %arg6: memref<1x16x128xf32, #tpu.memory_space<vmem>>, %arg7: memref<1x16x128xf32, #tpu.memory_space<vmem>>, %arg8: memref<4x16x1xf32, #tpu.memory_space<vmem>>, %arg9: memref<4x16x1xf32, #tpu.memory_space<vmem>>, %arg10: memref<4x16x32xf32, #tpu.memory_space<vmem>>, %arg11: memref<16x33xf32, #tpu.memory_space<vmem>>) attributes {dimension_semantics = [#tpu.dimension_semantics<parallel>, #tpu.dimension_semantics<parallel>, #tpu.dimension_semantics<parallel>, #tpu.dimension_semantics<arbitrary>], iteration_bounds = array<i64: 2, 1, 1, 1>, scalar_prefetch = 0 : i64, scratch_operands = 4 : i64, tpu.core_type = #tpu.core_type<tc>, window_params = [{transform_indices = @transform_0, window_bounds = array<i64: 1, 16, 128>}, {transform_indices = @transform_1, window_bounds = array<i64: 1, 16, 128>}, {transform_indices = @transform_2, window_bounds = array<i64: 1, 16, 128>}, {transform_indices = @transform_3, window_bounds = array<i64: 1, 16, 128>}]} {
    %c0_i32 = arith.constant 0 : i32
    %0 = arith.cmpi eq, %arg3, %c0_i32 : i32
    %1 = arith.extui %0 : i1 to i32
    %c0_i32_0 = arith.constant 0 : i32
    %2 = arith.cmpi ne, %1, %c0_i32_0 : i32
    scf.if %2 {
      %cst_135 = arith.constant 0xFF800000 : f32
      %174 = vector.broadcast %cst_135 : f32 to vector<4x16x1xf32>
      %c0_136 = arith.constant 0 : index
      %c0_137 = arith.constant 0 : index
      %c0_138 = arith.constant 0 : index
      %175 = vector.load %arg8[%c0_136, %c0_137, %c0_138] : memref<4x16x1xf32, #tpu.memory_space<vmem>>, vector<4x16x1xf32>
      tpu.vector_store %arg8[%c0_136, %c0_137, %c0_138], %174 {strides = array<i32>} : memref<4x16x1xf32, #tpu.memory_space<vmem>>, vector<4x16x1xf32>,
      %cst_139 = arith.constant 0.000000e+00 : f32
      %176 = vector.broadcast %cst_139 : f32 to vector<4x16x1xf32>
      %c0_140 = arith.constant 0 : index
      %c0_141 = arith.constant 0 : index
      %c0_142 = arith.constant 0 : index
      %177 = vector.load %arg9[%c0_140, %c0_141, %c0_142] : memref<4x16x1xf32, #tpu.memory_space<vmem>>, vector<4x16x1xf32>
      tpu.vector_store %arg9[%c0_140, %c0_141, %c0_142], %176 {strides = array<i32>} : memref<4x16x1xf32, #tpu.memory_space<vmem>>, vector<4x16x1xf32>,
      %cst_143 = arith.constant 0.000000e+00 : f32
      %178 = vector.broadcast %cst_143 : f32 to vector<4x16x32xf32>
      %c0_144 = arith.constant 0 : index
      %c0_145 = arith.constant 0 : index
      %c0_146 = arith.constant 0 : index
      %179 = vector.load %arg10[%c0_144, %c0_145, %c0_146] : memref<4x16x32xf32, #tpu.memory_space<vmem>>, vector<4x16x32xf32>
      tpu.vector_store %arg10[%c0_144, %c0_145, %c0_146], %178 {strides = array<i32>} : memref<4x16x32xf32, #tpu.memory_space<vmem>>, vector<4x16x32xf32>,
    } else {
    }
    %c0 = arith.constant 0 : index
    %c0_1 = arith.constant 0 : index
    %c0_2 = arith.constant 0 : index
    %3 = vector.load %arg4[%c0, %c0_1, %c0_2] : memref<1x16x128xf32, #tpu.memory_space<vmem>>, vector<1x16x128xf32>
    %4 = vector.shape_cast %3 : vector<1x16x128xf32> to vector<16x128xf32>
    %cst = arith.constant 0.176776692 : f32
    %5 = vector.broadcast %cst : f32 to vector<16x128xf32>
    %6 = arith.mulf %4, %5 : vector<16x128xf32>
    %7 = vector.extract_strided_slice %6 {offsets = [0, 0], sizes = [16, 32], strides = [1, 1]} : vector<16x128xf32> to vector<16x32xf32>
    %c0_3 = arith.constant 0 : index
    %c0_4 = arith.constant 0 : index
    %c0_5 = arith.constant 0 : index
    %8 = vector.load %arg5[%c0_3, %c0_4, %c0_5] : memref<1x16x128xf32, #tpu.memory_space<vmem>>, vector<1x16x32xf32>
    %9 = vector.shape_cast %8 : vector<1x16x32xf32> to vector<16x32xf32>
    %cst_6 = arith.constant dense<0.000000e+00> : vector<16x16xf32>
    %10 = tpu.matmul %7, %9, %cst_6 {dimension_numbers = #tpu.dot_dimension_numbers<[1], [1], [0], [0], [0, 0, 1, 0], [], []>} : vector<16x32xf32>, vector<16x32xf32>, vector<16x16xf32> -> vector<16x16xf32>
    %c0_7 = arith.constant 0 : index
    %c0_8 = arith.constant 0 : index
    %c0_9 = arith.constant 0 : index
    %11 = vector.load %arg8[%c0_7, %c0_8, %c0_9] : memref<4x16x1xf32, #tpu.memory_space<vmem>>, vector<1x16x1xf32>
    %12 = vector.shape_cast %11 : vector<1x16x1xf32> to vector<16x1xf32>
    %cst_10 = arith.constant dense<0xFF800000> : vector<16xf32>
    %13 = vector.multi_reduction <maximumf>, %10, %cst_10 [1] : vector<16x16xf32> to vector<16xf32>
    %14 = vector.shape_cast %13 : vector<16xf32> to vector<16x1xf32>
    %15 = arith.maximumf %12, %14 : vector<16x1xf32>
    %16 = arith.subf %12, %15 : vector<16x1xf32>
    %17 = math.exp %16 : vector<16x1xf32>
    %18 = vector.broadcast %15 : vector<16x1xf32> to vector<16x16xf32>
    %19 = arith.subf %10, %18 : vector<16x16xf32>
    %20 = math.exp %19 : vector<16x16xf32>
    %c0_11 = arith.constant 0 : index
    %c0_12 = arith.constant 0 : index
    %c0_13 = arith.constant 0 : index
    %21 = vector.load %arg6[%c0_11, %c0_12, %c0_13] : memref<1x16x128xf32, #tpu.memory_space<vmem>>, vector<1x16x32xf32>
    %22 = vector.shape_cast %21 : vector<1x16x32xf32> to vector<16x32xf32>
    %c0_14 = arith.constant 0 : index
    %c0_15 = arith.constant 0 : index
    %23 = vector.load %arg11[%c0_14, %c0_15] : memref<16x33xf32, #tpu.memory_space<vmem>>, vector<16x32xf32>
    tpu.vector_store %arg11[%c0_14, %c0_15], %22 {strides = array<i32>} : memref<16x33xf32, #tpu.memory_space<vmem>>, vector<16x32xf32>,
    %cst_16 = arith.constant 1.000000e+00 : f32
    %24 = vector.broadcast %cst_16 : f32 to vector<16x1xf32>
    %c0_17 = arith.constant 0 : index
    %c32 = arith.constant 32 : index
    %25 = vector.load %arg11[%c0_17, %c32] : memref<16x33xf32, #tpu.memory_space<vmem>>, vector<16x1xf32>
    tpu.vector_store %arg11[%c0_17, %c32], %24 {strides = array<i32>} : memref<16x33xf32, #tpu.memory_space<vmem>>, vector<16x1xf32>,
    %c0_18 = arith.constant 0 : index
    %c0_19 = arith.constant 0 : index
    %26 = vector.load %arg11[%c0_18, %c0_19] : memref<16x33xf32, #tpu.memory_space<vmem>>, vector<16x33xf32>
    %cst_20 = arith.constant dense<0.000000e+00> : vector<16x33xf32>
    %27 = tpu.matmul %20, %26, %cst_20 {dimension_numbers = #tpu.dot_dimension_numbers<[1], [0], [0], [1], [0, 0, 1, 1], [], []>} : vector<16x16xf32>, vector<16x33xf32>, vector<16x33xf32> -> vector<16x33xf32>
    %28 = vector.extract_strided_slice %27 {offsets = [0, 0], sizes = [16, 32], strides = [1, 1]} : vector<16x33xf32> to vector<16x32xf32>
    %29 = vector.extract_strided_slice %27 {offsets = [0, 32], sizes = [16, 1], strides = [1, 1]} : vector<16x33xf32> to vector<16x1xf32>
    %c0_21 = arith.constant 0 : index
    %c0_22 = arith.constant 0 : index
    %c0_23 = arith.constant 0 : index
    %30 = vector.load %arg8[%c0_21, %c0_22, %c0_23] : memref<4x16x1xf32, #tpu.memory_space<vmem>>, vector<1x16x1xf32>
    %31 = vector.shape_cast %30 : vector<1x16x1xf32> to vector<16x1xf32>
    %32 = vector.shape_cast %15 : vector<16x1xf32> to vector<1x16x1xf32>
    tpu.vector_store %arg8[%c0_21, %c0_22, %c0_23], %32 {strides = array<i32>} : memref<4x16x1xf32, #tpu.memory_space<vmem>>, vector<1x16x1xf32>,
    %c0_24 = arith.constant 0 : index
    %c0_25 = arith.constant 0 : index
    %c0_26 = arith.constant 0 : index
    %33 = vector.load %arg9[%c0_24, %c0_25, %c0_26] : memref<4x16x1xf32, #tpu.memory_space<vmem>>, vector<1x16x1xf32>
    %34 = vector.shape_cast %33 : vector<1x16x1xf32> to vector<16x1xf32>
    %35 = arith.mulf %17, %34 : vector<16x1xf32>
    %36 = arith.addf %35, %29 : vector<16x1xf32>
    %c0_27 = arith.constant 0 : index
    %c0_28 = arith.constant 0 : index
    %c0_29 = arith.constant 0 : index
    %37 = vector.load %arg9[%c0_27, %c0_28, %c0_29] : memref<4x16x1xf32, #tpu.memory_space<vmem>>, vector<1x16x1xf32>
    %38 = vector.shape_cast %37 : vector<1x16x1xf32> to vector<16x1xf32>
    %39 = vector.shape_cast %36 : vector<16x1xf32> to vector<1x16x1xf32>
    tpu.vector_store %arg9[%c0_27, %c0_28, %c0_29], %39 {strides = array<i32>} : memref<4x16x1xf32, #tpu.memory_space<vmem>>, vector<1x16x1xf32>,
    %c0_30 = arith.constant 0 : index
    %c0_31 = arith.constant 0 : index
    %c0_32 = arith.constant 0 : index
    %40 = vector.load %arg10[%c0_30, %c0_31, %c0_32] : memref<4x16x32xf32, #tpu.memory_space<vmem>>, vector<1x16x32xf32>
    %41 = vector.shape_cast %40 : vector<1x16x32xf32> to vector<16x32xf32>
    %42 = vector.broadcast %17 : vector<16x1xf32> to vector<16x32xf32>
    %43 = arith.mulf %42, %41 : vector<16x32xf32>
    %44 = arith.addf %43, %28 : vector<16x32xf32>
    %c0_33 = arith.constant 0 : index
    %c0_34 = arith.constant 0 : index
    %c0_35 = arith.constant 0 : index
    %45 = vector.load %arg10[%c0_33, %c0_34, %c0_35] : memref<4x16x32xf32, #tpu.memory_space<vmem>>, vector<1x16x32xf32>
    %46 = vector.shape_cast %45 : vector<1x16x32xf32> to vector<16x32xf32>
    %47 = vector.shape_cast %44 : vector<16x32xf32> to vector<1x16x32xf32>
    tpu.vector_store %arg10[%c0_33, %c0_34, %c0_35], %47 {strides = array<i32>} : memref<4x16x32xf32, #tpu.memory_space<vmem>>, vector<1x16x32xf32>,
    %48 = vector.extract_strided_slice %6 {offsets = [0, 32], sizes = [16, 32], strides = [1, 1]} : vector<16x128xf32> to vector<16x32xf32>
    %c0_36 = arith.constant 0 : index
    %c0_37 = arith.constant 0 : index
    %c32_38 = arith.constant 32 : index
    %49 = vector.load %arg5[%c0_36, %c0_37, %c32_38] : memref<1x16x128xf32, #tpu.memory_space<vmem>>, vector<1x16x32xf32>
    %50 = vector.shape_cast %49 : vector<1x16x32xf32> to vector<16x32xf32>
    %cst_39 = arith.constant dense<0.000000e+00> : vector<16x16xf32>
    %51 = tpu.matmul %48, %50, %cst_39 {dimension_numbers = #tpu.dot_dimension_numbers<[1], [1], [0], [0], [0, 0, 1, 0], [], []>} : vector<16x32xf32>, vector<16x32xf32>, vector<16x16xf32> -> vector<16x16xf32>
    %c1 = arith.constant 1 : index
    %c0_40 = arith.constant 0 : index
    %c0_41 = arith.constant 0 : index
    %52 = vector.load %arg8[%c1, %c0_40, %c0_41] : memref<4x16x1xf32, #tpu.memory_space<vmem>>, vector<1x16x1xf32>
    %53 = vector.shape_cast %52 : vector<1x16x1xf32> to vector<16x1xf32>
    %cst_42 = arith.constant dense<0xFF800000> : vector<16xf32>
    %54 = vector.multi_reduction <maximumf>, %51, %cst_42 [1] : vector<16x16xf32> to vector<16xf32>
    %55 = vector.shape_cast %54 : vector<16xf32> to vector<16x1xf32>
    %56 = arith.maximumf %53, %55 : vector<16x1xf32>
    %57 = arith.subf %53, %56 : vector<16x1xf32>
    %58 = math.exp %57 : vector<16x1xf32>
    %59 = vector.broadcast %56 : vector<16x1xf32> to vector<16x16xf32>
    %60 = arith.subf %51, %59 : vector<16x16xf32>
    %61 = math.exp %60 : vector<16x16xf32>
    %c0_43 = arith.constant 0 : index
    %c0_44 = arith.constant 0 : index
    %c32_45 = arith.constant 32 : index
    %62 = vector.load %arg6[%c0_43, %c0_44, %c32_45] : memref<1x16x128xf32, #tpu.memory_space<vmem>>, vector<1x16x32xf32>
    %63 = vector.shape_cast %62 : vector<1x16x32xf32> to vector<16x32xf32>
    %c0_46 = arith.constant 0 : index
    %c0_47 = arith.constant 0 : index
    %64 = vector.load %arg11[%c0_46, %c0_47] : memref<16x33xf32, #tpu.memory_space<vmem>>, vector<16x32xf32>
    tpu.vector_store %arg11[%c0_46, %c0_47], %63 {strides = array<i32>} : memref<16x33xf32, #tpu.memory_space<vmem>>, vector<16x32xf32>,
    %cst_48 = arith.constant 1.000000e+00 : f32
    %65 = vector.broadcast %cst_48 : f32 to vector<16x1xf32>
    %c0_49 = arith.constant 0 : index
    %c32_50 = arith.constant 32 : index
    %66 = vector.load %arg11[%c0_49, %c32_50] : memref<16x33xf32, #tpu.memory_space<vmem>>, vector<16x1xf32>
    tpu.vector_store %arg11[%c0_49, %c32_50], %65 {strides = array<i32>} : memref<16x33xf32, #tpu.memory_space<vmem>>, vector<16x1xf32>,
    %c0_51 = arith.constant 0 : index
    %c0_52 = arith.constant 0 : index
    %67 = vector.load %arg11[%c0_51, %c0_52] : memref<16x33xf32, #tpu.memory_space<vmem>>, vector<16x33xf32>
    %cst_53 = arith.constant dense<0.000000e+00> : vector<16x33xf32>
    %68 = tpu.matmul %61, %67, %cst_53 {dimension_numbers = #tpu.dot_dimension_numbers<[1], [0], [0], [1], [0, 0, 1, 1], [], []>} : vector<16x16xf32>, vector<16x33xf32>, vector<16x33xf32> -> vector<16x33xf32>
    %69 = vector.extract_strided_slice %68 {offsets = [0, 0], sizes = [16, 32], strides = [1, 1]} : vector<16x33xf32> to vector<16x32xf32>
    %70 = vector.extract_strided_slice %68 {offsets = [0, 32], sizes = [16, 1], strides = [1, 1]} : vector<16x33xf32> to vector<16x1xf32>
    %c1_54 = arith.constant 1 : index
    %c0_55 = arith.constant 0 : index
    %c0_56 = arith.constant 0 : index
    %71 = vector.load %arg8[%c1_54, %c0_55, %c0_56] : memref<4x16x1xf32, #tpu.memory_space<vmem>>, vector<1x16x1xf32>
    %72 = vector.shape_cast %71 : vector<1x16x1xf32> to vector<16x1xf32>
    %73 = vector.shape_cast %56 : vector<16x1xf32> to vector<1x16x1xf32>
    tpu.vector_store %arg8[%c1_54, %c0_55, %c0_56], %73 {strides = array<i32>} : memref<4x16x1xf32, #tpu.memory_space<vmem>>, vector<1x16x1xf32>,
    %c1_57 = arith.constant 1 : index
    %c0_58 = arith.constant 0 : index
    %c0_59 = arith.constant 0 : index
    %74 = vector.load %arg9[%c1_57, %c0_58, %c0_59] : memref<4x16x1xf32, #tpu.memory_space<vmem>>, vector<1x16x1xf32>
    %75 = vector.shape_cast %74 : vector<1x16x1xf32> to vector<16x1xf32>
    %76 = arith.mulf %58, %75 : vector<16x1xf32>
    %77 = arith.addf %76, %70 : vector<16x1xf32>
    %c1_60 = arith.constant 1 : index
    %c0_61 = arith.constant 0 : index
    %c0_62 = arith.constant 0 : index
    %78 = vector.load %arg9[%c1_60, %c0_61, %c0_62] : memref<4x16x1xf32, #tpu.memory_space<vmem>>, vector<1x16x1xf32>
    %79 = vector.shape_cast %78 : vector<1x16x1xf32> to vector<16x1xf32>
    %80 = vector.shape_cast %77 : vector<16x1xf32> to vector<1x16x1xf32>
    tpu.vector_store %arg9[%c1_60, %c0_61, %c0_62], %80 {strides = array<i32>} : memref<4x16x1xf32, #tpu.memory_space<vmem>>, vector<1x16x1xf32>,
    %c1_63 = arith.constant 1 : index
    %c0_64 = arith.constant 0 : index
    %c0_65 = arith.constant 0 : index
    %81 = vector.load %arg10[%c1_63, %c0_64, %c0_65] : memref<4x16x32xf32, #tpu.memory_space<vmem>>, vector<1x16x32xf32>
    %82 = vector.shape_cast %81 : vector<1x16x32xf32> to vector<16x32xf32>
    %83 = vector.broadcast %58 : vector<16x1xf32> to vector<16x32xf32>
    %84 = arith.mulf %83, %82 : vector<16x32xf32>
    %85 = arith.addf %84, %69 : vector<16x32xf32>
    %c1_66 = arith.constant 1 : index
    %c0_67 = arith.constant 0 : index
    %c0_68 = arith.constant 0 : index
    %86 = vector.load %arg10[%c1_66, %c0_67, %c0_68] : memref<4x16x32xf32, #tpu.memory_space<vmem>>, vector<1x16x32xf32>
    %87 = vector.shape_cast %86 : vector<1x16x32xf32> to vector<16x32xf32>
    %88 = vector.shape_cast %85 : vector<16x32xf32> to vector<1x16x32xf32>
    tpu.vector_store %arg10[%c1_66, %c0_67, %c0_68], %88 {strides = array<i32>} : memref<4x16x32xf32, #tpu.memory_space<vmem>>, vector<1x16x32xf32>,
    %89 = vector.extract_strided_slice %6 {offsets = [0, 64], sizes = [16, 32], strides = [1, 1]} : vector<16x128xf32> to vector<16x32xf32>
    %c0_69 = arith.constant 0 : index
    %c0_70 = arith.constant 0 : index
    %c64 = arith.constant 64 : index
    %90 = vector.load %arg5[%c0_69, %c0_70, %c64] : memref<1x16x128xf32, #tpu.memory_space<vmem>>, vector<1x16x32xf32>
    %91 = vector.shape_cast %90 : vector<1x16x32xf32> to vector<16x32xf32>
    %cst_71 = arith.constant dense<0.000000e+00> : vector<16x16xf32>
    %92 = tpu.matmul %89, %91, %cst_71 {dimension_numbers = #tpu.dot_dimension_numbers<[1], [1], [0], [0], [0, 0, 1, 0], [], []>} : vector<16x32xf32>, vector<16x32xf32>, vector<16x16xf32> -> vector<16x16xf32>
    %c2 = arith.constant 2 : index
    %c0_72 = arith.constant 0 : index
    %c0_73 = arith.constant 0 : index
    %93 = vector.load %arg8[%c2, %c0_72, %c0_73] : memref<4x16x1xf32, #tpu.memory_space<vmem>>, vector<1x16x1xf32>
    %94 = vector.shape_cast %93 : vector<1x16x1xf32> to vector<16x1xf32>
    %cst_74 = arith.constant dense<0xFF800000> : vector<16xf32>
    %95 = vector.multi_reduction <maximumf>, %92, %cst_74 [1] : vector<16x16xf32> to vector<16xf32>
    %96 = vector.shape_cast %95 : vector<16xf32> to vector<16x1xf32>
    %97 = arith.maximumf %94, %96 : vector<16x1xf32>
    %98 = arith.subf %94, %97 : vector<16x1xf32>
    %99 = math.exp %98 : vector<16x1xf32>
    %100 = vector.broadcast %97 : vector<16x1xf32> to vector<16x16xf32>
    %101 = arith.subf %92, %100 : vector<16x16xf32>
    %102 = math.exp %101 : vector<16x16xf32>
    %c0_75 = arith.constant 0 : index
    %c0_76 = arith.constant 0 : index
    %c64_77 = arith.constant 64 : index
    %103 = vector.load %arg6[%c0_75, %c0_76, %c64_77] : memref<1x16x128xf32, #tpu.memory_space<vmem>>, vector<1x16x32xf32>
    %104 = vector.shape_cast %103 : vector<1x16x32xf32> to vector<16x32xf32>
    %c0_78 = arith.constant 0 : index
    %c0_79 = arith.constant 0 : index
    %105 = vector.load %arg11[%c0_78, %c0_79] : memref<16x33xf32, #tpu.memory_space<vmem>>, vector<16x32xf32>
    tpu.vector_store %arg11[%c0_78, %c0_79], %104 {strides = array<i32>} : memref<16x33xf32, #tpu.memory_space<vmem>>, vector<16x32xf32>,
    %cst_80 = arith.constant 1.000000e+00 : f32
    %106 = vector.broadcast %cst_80 : f32 to vector<16x1xf32>
    %c0_81 = arith.constant 0 : index
    %c32_82 = arith.constant 32 : index
    %107 = vector.load %arg11[%c0_81, %c32_82] : memref<16x33xf32, #tpu.memory_space<vmem>>, vector<16x1xf32>
    tpu.vector_store %arg11[%c0_81, %c32_82], %106 {strides = array<i32>} : memref<16x33xf32, #tpu.memory_space<vmem>>, vector<16x1xf32>,
    %c0_83 = arith.constant 0 : index
    %c0_84 = arith.constant 0 : index
    %108 = vector.load %arg11[%c0_83, %c0_84] : memref<16x33xf32, #tpu.memory_space<vmem>>, vector<16x33xf32>
    %cst_85 = arith.constant dense<0.000000e+00> : vector<16x33xf32>
    %109 = tpu.matmul %102, %108, %cst_85 {dimension_numbers = #tpu.dot_dimension_numbers<[1], [0], [0], [1], [0, 0, 1, 1], [], []>} : vector<16x16xf32>, vector<16x33xf32>, vector<16x33xf32> -> vector<16x33xf32>
    %110 = vector.extract_strided_slice %109 {offsets = [0, 0], sizes = [16, 32], strides = [1, 1]} : vector<16x33xf32> to vector<16x32xf32>
    %111 = vector.extract_strided_slice %109 {offsets = [0, 32], sizes = [16, 1], strides = [1, 1]} : vector<16x33xf32> to vector<16x1xf32>
    %c2_86 = arith.constant 2 : index
    %c0_87 = arith.constant 0 : index
    %c0_88 = arith.constant 0 : index
    %112 = vector.load %arg8[%c2_86, %c0_87, %c0_88] : memref<4x16x1xf32, #tpu.memory_space<vmem>>, vector<1x16x1xf32>
    %113 = vector.shape_cast %112 : vector<1x16x1xf32> to vector<16x1xf32>
    %114 = vector.shape_cast %97 : vector<16x1xf32> to vector<1x16x1xf32>
    tpu.vector_store %arg8[%c2_86, %c0_87, %c0_88], %114 {strides = array<i32>} : memref<4x16x1xf32, #tpu.memory_space<vmem>>, vector<1x16x1xf32>,
    %c2_89 = arith.constant 2 : index
    %c0_90 = arith.constant 0 : index
    %c0_91 = arith.constant 0 : index
    %115 = vector.load %arg9[%c2_89, %c0_90, %c0_91] : memref<4x16x1xf32, #tpu.memory_space<vmem>>, vector<1x16x1xf32>
    %116 = vector.shape_cast %115 : vector<1x16x1xf32> to vector<16x1xf32>
    %117 = arith.mulf %99, %116 : vector<16x1xf32>
    %118 = arith.addf %117, %111 : vector<16x1xf32>
    %c2_92 = arith.constant 2 : index
    %c0_93 = arith.constant 0 : index
    %c0_94 = arith.constant 0 : index
    %119 = vector.load %arg9[%c2_92, %c0_93, %c0_94] : memref<4x16x1xf32, #tpu.memory_space<vmem>>, vector<1x16x1xf32>
    %120 = vector.shape_cast %119 : vector<1x16x1xf32> to vector<16x1xf32>
    %121 = vector.shape_cast %118 : vector<16x1xf32> to vector<1x16x1xf32>
    tpu.vector_store %arg9[%c2_92, %c0_93, %c0_94], %121 {strides = array<i32>} : memref<4x16x1xf32, #tpu.memory_space<vmem>>, vector<1x16x1xf32>,
    %c2_95 = arith.constant 2 : index
    %c0_96 = arith.constant 0 : index
    %c0_97 = arith.constant 0 : index
    %122 = vector.load %arg10[%c2_95, %c0_96, %c0_97] : memref<4x16x32xf32, #tpu.memory_space<vmem>>, vector<1x16x32xf32>
    %123 = vector.shape_cast %122 : vector<1x16x32xf32> to vector<16x32xf32>
    %124 = vector.broadcast %99 : vector<16x1xf32> to vector<16x32xf32>
    %125 = arith.mulf %124, %123 : vector<16x32xf32>
    %126 = arith.addf %125, %110 : vector<16x32xf32>
    %c2_98 = arith.constant 2 : index
    %c0_99 = arith.constant 0 : index
    %c0_100 = arith.constant 0 : index
    %127 = vector.load %arg10[%c2_98, %c0_99, %c0_100] : memref<4x16x32xf32, #tpu.memory_space<vmem>>, vector<1x16x32xf32>
    %128 = vector.shape_cast %127 : vector<1x16x32xf32> to vector<16x32xf32>
    %129 = vector.shape_cast %126 : vector<16x32xf32> to vector<1x16x32xf32>
    tpu.vector_store %arg10[%c2_98, %c0_99, %c0_100], %129 {strides = array<i32>} : memref<4x16x32xf32, #tpu.memory_space<vmem>>, vector<1x16x32xf32>,
    %130 = vector.extract_strided_slice %6 {offsets = [0, 96], sizes = [16, 32], strides = [1, 1]} : vector<16x128xf32> to vector<16x32xf32>
    %c0_101 = arith.constant 0 : index
    %c0_102 = arith.constant 0 : index
    %c96 = arith.constant 96 : index
    %131 = vector.load %arg5[%c0_101, %c0_102, %c96] : memref<1x16x128xf32, #tpu.memory_space<vmem>>, vector<1x16x32xf32>
    %132 = vector.shape_cast %131 : vector<1x16x32xf32> to vector<16x32xf32>
    %cst_103 = arith.constant dense<0.000000e+00> : vector<16x16xf32>
    %133 = tpu.matmul %130, %132, %cst_103 {dimension_numbers = #tpu.dot_dimension_numbers<[1], [1], [0], [0], [0, 0, 1, 0], [], []>} : vector<16x32xf32>, vector<16x32xf32>, vector<16x16xf32> -> vector<16x16xf32>
    %c3 = arith.constant 3 : index
    %c0_104 = arith.constant 0 : index
    %c0_105 = arith.constant 0 : index
    %134 = vector.load %arg8[%c3, %c0_104, %c0_105] : memref<4x16x1xf32, #tpu.memory_space<vmem>>, vector<1x16x1xf32>
    %135 = vector.shape_cast %134 : vector<1x16x1xf32> to vector<16x1xf32>
    %cst_106 = arith.constant dense<0xFF800000> : vector<16xf32>
    %136 = vector.multi_reduction <maximumf>, %133, %cst_106 [1] : vector<16x16xf32> to vector<16xf32>
    %137 = vector.shape_cast %136 : vector<16xf32> to vector<16x1xf32>
    %138 = arith.maximumf %135, %137 : vector<16x1xf32>
    %139 = arith.subf %135, %138 : vector<16x1xf32>
    %140 = math.exp %139 : vector<16x1xf32>
    %141 = vector.broadcast %138 : vector<16x1xf32> to vector<16x16xf32>
    %142 = arith.subf %133, %141 : vector<16x16xf32>
    %143 = math.exp %142 : vector<16x16xf32>
    %c0_107 = arith.constant 0 : index
    %c0_108 = arith.constant 0 : index
    %c96_109 = arith.constant 96 : index
    %144 = vector.load %arg6[%c0_107, %c0_108, %c96_109] : memref<1x16x128xf32, #tpu.memory_space<vmem>>, vector<1x16x32xf32>
    %145 = vector.shape_cast %144 : vector<1x16x32xf32> to vector<16x32xf32>
    %c0_110 = arith.constant 0 : index
    %c0_111 = arith.constant 0 : index
    %146 = vector.load %arg11[%c0_110, %c0_111] : memref<16x33xf32, #tpu.memory_space<vmem>>, vector<16x32xf32>
    tpu.vector_store %arg11[%c0_110, %c0_111], %145 {strides = array<i32>} : memref<16x33xf32, #tpu.memory_space<vmem>>, vector<16x32xf32>,
    %cst_112 = arith.constant 1.000000e+00 : f32
    %147 = vector.broadcast %cst_112 : f32 to vector<16x1xf32>
    %c0_113 = arith.constant 0 : index
    %c32_114 = arith.constant 32 : index
    %148 = vector.load %arg11[%c0_113, %c32_114] : memref<16x33xf32, #tpu.memory_space<vmem>>, vector<16x1xf32>
    tpu.vector_store %arg11[%c0_113, %c32_114], %147 {strides = array<i32>} : memref<16x33xf32, #tpu.memory_space<vmem>>, vector<16x1xf32>,
    %c0_115 = arith.constant 0 : index
    %c0_116 = arith.constant 0 : index
    %149 = vector.load %arg11[%c0_115, %c0_116] : memref<16x33xf32, #tpu.memory_space<vmem>>, vector<16x33xf32>
    %cst_117 = arith.constant dense<0.000000e+00> : vector<16x33xf32>
    %150 = tpu.matmul %143, %149, %cst_117 {dimension_numbers = #tpu.dot_dimension_numbers<[1], [0], [0], [1], [0, 0, 1, 1], [], []>} : vector<16x16xf32>, vector<16x33xf32>, vector<16x33xf32> -> vector<16x33xf32>
    %151 = vector.extract_strided_slice %150 {offsets = [0, 0], sizes = [16, 32], strides = [1, 1]} : vector<16x33xf32> to vector<16x32xf32>
    %152 = vector.extract_strided_slice %150 {offsets = [0, 32], sizes = [16, 1], strides = [1, 1]} : vector<16x33xf32> to vector<16x1xf32>
    %c3_118 = arith.constant 3 : index
    %c0_119 = arith.constant 0 : index
    %c0_120 = arith.constant 0 : index
    %153 = vector.load %arg8[%c3_118, %c0_119, %c0_120] : memref<4x16x1xf32, #tpu.memory_space<vmem>>, vector<1x16x1xf32>
    %154 = vector.shape_cast %153 : vector<1x16x1xf32> to vector<16x1xf32>
    %155 = vector.shape_cast %138 : vector<16x1xf32> to vector<1x16x1xf32>
    tpu.vector_store %arg8[%c3_118, %c0_119, %c0_120], %155 {strides = array<i32>} : memref<4x16x1xf32, #tpu.memory_space<vmem>>, vector<1x16x1xf32>,
    %c3_121 = arith.constant 3 : index
    %c0_122 = arith.constant 0 : index
    %c0_123 = arith.constant 0 : index
    %156 = vector.load %arg9[%c3_121, %c0_122, %c0_123] : memref<4x16x1xf32, #tpu.memory_space<vmem>>, vector<1x16x1xf32>
    %157 = vector.shape_cast %156 : vector<1x16x1xf32> to vector<16x1xf32>
    %158 = arith.mulf %140, %157 : vector<16x1xf32>
    %159 = arith.addf %158, %152 : vector<16x1xf32>
    %c3_124 = arith.constant 3 : index
    %c0_125 = arith.constant 0 : index
    %c0_126 = arith.constant 0 : index
    %160 = vector.load %arg9[%c3_124, %c0_125, %c0_126] : memref<4x16x1xf32, #tpu.memory_space<vmem>>, vector<1x16x1xf32>
    %161 = vector.shape_cast %160 : vector<1x16x1xf32> to vector<16x1xf32>
    %162 = vector.shape_cast %159 : vector<16x1xf32> to vector<1x16x1xf32>
    tpu.vector_store %arg9[%c3_124, %c0_125, %c0_126], %162 {strides = array<i32>} : memref<4x16x1xf32, #tpu.memory_space<vmem>>, vector<1x16x1xf32>,
    %c3_127 = arith.constant 3 : index
    %c0_128 = arith.constant 0 : index
    %c0_129 = arith.constant 0 : index
    %163 = vector.load %arg10[%c3_127, %c0_128, %c0_129] : memref<4x16x32xf32, #tpu.memory_space<vmem>>, vector<1x16x32xf32>
    %164 = vector.shape_cast %163 : vector<1x16x32xf32> to vector<16x32xf32>
    %165 = vector.broadcast %140 : vector<16x1xf32> to vector<16x32xf32>
    %166 = arith.mulf %165, %164 : vector<16x32xf32>
    %167 = arith.addf %166, %151 : vector<16x32xf32>
    %c3_130 = arith.constant 3 : index
    %c0_131 = arith.constant 0 : index
    %c0_132 = arith.constant 0 : index
    %168 = vector.load %arg10[%c3_130, %c0_131, %c0_132] : memref<4x16x32xf32, #tpu.memory_space<vmem>>, vector<1x16x32xf32>
    %169 = vector.shape_cast %168 : vector<1x16x32xf32> to vector<16x32xf32>
    %170 = vector.shape_cast %167 : vector<16x32xf32> to vector<1x16x32xf32>
    tpu.vector_store %arg10[%c3_130, %c0_131, %c0_132], %170 {strides = array<i32>} : memref<4x16x32xf32, #tpu.memory_space<vmem>>, vector<1x16x32xf32>,
    %c0_i32_133 = arith.constant 0 : i32
    %171 = arith.cmpi eq, %arg3, %c0_i32_133 : i32
    %172 = arith.extui %171 : i1 to i32
    %c0_i32_134 = arith.constant 0 : i32
    %173 = arith.cmpi ne, %172, %c0_i32_134 : i32
    scf.if %173 {
      %c0_135 = arith.constant 0 : index
      %c0_136 = arith.constant 0 : index
      %c0_137 = arith.constant 0 : index
      %174 = vector.load %arg9[%c0_135, %c0_136, %c0_137] : memref<4x16x1xf32, #tpu.memory_space<vmem>>, vector<1x16x1xf32>
      %175 = vector.shape_cast %174 : vector<1x16x1xf32> to vector<16x1xf32>
      %176 = tpu.reciprocal %175 {approx = true} : vector<16x1xf32> -> vector<16x1xf32>
      %c0_138 = arith.constant 0 : index
      %c0_139 = arith.constant 0 : index
      %c0_140 = arith.constant 0 : index
      %177 = vector.load %arg10[%c0_138, %c0_139, %c0_140] : memref<4x16x32xf32, #tpu.memory_space<vmem>>, vector<1x16x32xf32>
      %178 = vector.shape_cast %177 : vector<1x16x32xf32> to vector<16x32xf32>
      %179 = vector.broadcast %176 : vector<16x1xf32> to vector<16x32xf32>
      %180 = arith.mulf %178, %179 : vector<16x32xf32>
      %c0_141 = arith.constant 0 : index
      %c0_142 = arith.constant 0 : index
      %c0_143 = arith.constant 0 : index
      %181 = vector.load %arg7[%c0_141, %c0_142, %c0_143] : memref<1x16x128xf32, #tpu.memory_space<vmem>>, vector<1x16x32xf32>
      %182 = vector.shape_cast %181 : vector<1x16x32xf32> to vector<16x32xf32>
      %183 = vector.shape_cast %180 : vector<16x32xf32> to vector<1x16x32xf32>
      tpu.vector_store %arg7[%c0_141, %c0_142, %c0_143], %183 {strides = array<i32>} : memref<1x16x128xf32, #tpu.memory_space<vmem>>, vector<1x16x32xf32>,
      %c1_144 = arith.constant 1 : index
      %c0_145 = arith.constant 0 : index
      %c0_146 = arith.constant 0 : index
      %184 = vector.load %arg9[%c1_144, %c0_145, %c0_146] : memref<4x16x1xf32, #tpu.memory_space<vmem>>, vector<1x16x1xf32>
      %185 = vector.shape_cast %184 : vector<1x16x1xf32> to vector<16x1xf32>
      %186 = tpu.reciprocal %185 {approx = true} : vector<16x1xf32> -> vector<16x1xf32>
      %c1_147 = arith.constant 1 : index
      %c0_148 = arith.constant 0 : index
      %c0_149 = arith.constant 0 : index
      %187 = vector.load %arg10[%c1_147, %c0_148, %c0_149] : memref<4x16x32xf32, #tpu.memory_space<vmem>>, vector<1x16x32xf32>
      %188 = vector.shape_cast %187 : vector<1x16x32xf32> to vector<16x32xf32>
      %189 = vector.broadcast %186 : vector<16x1xf32> to vector<16x32xf32>
      %190 = arith.mulf %188, %189 : vector<16x32xf32>
      %c0_150 = arith.constant 0 : index
      %c0_151 = arith.constant 0 : index
      %c32_152 = arith.constant 32 : index
      %191 = vector.load %arg7[%c0_150, %c0_151, %c32_152] : memref<1x16x128xf32, #tpu.memory_space<vmem>>, vector<1x16x32xf32>
      %192 = vector.shape_cast %191 : vector<1x16x32xf32> to vector<16x32xf32>
      %193 = vector.shape_cast %190 : vector<16x32xf32> to vector<1x16x32xf32>
      tpu.vector_store %arg7[%c0_150, %c0_151, %c32_152], %193 {strides = array<i32>} : memref<1x16x128xf32, #tpu.memory_space<vmem>>, vector<1x16x32xf32>,
      %c2_153 = arith.constant 2 : index
      %c0_154 = arith.constant 0 : index
      %c0_155 = arith.constant 0 : index
      %194 = vector.load %arg9[%c2_153, %c0_154, %c0_155] : memref<4x16x1xf32, #tpu.memory_space<vmem>>, vector<1x16x1xf32>
      %195 = vector.shape_cast %194 : vector<1x16x1xf32> to vector<16x1xf32>
      %196 = tpu.reciprocal %195 {approx = true} : vector<16x1xf32> -> vector<16x1xf32>
      %c2_156 = arith.constant 2 : index
      %c0_157 = arith.constant 0 : index
      %c0_158 = arith.constant 0 : index
      %197 = vector.load %arg10[%c2_156, %c0_157, %c0_158] : memref<4x16x32xf32, #tpu.memory_space<vmem>>, vector<1x16x32xf32>
      %198 = vector.shape_cast %197 : vector<1x16x32xf32> to vector<16x32xf32>
      %199 = vector.broadcast %196 : vector<16x1xf32> to vector<16x32xf32>
      %200 = arith.mulf %198, %199 : vector<16x32xf32>
      %c0_159 = arith.constant 0 : index
      %c0_160 = arith.constant 0 : index
      %c64_161 = arith.constant 64 : index
      %201 = vector.load %arg7[%c0_159, %c0_160, %c64_161] : memref<1x16x128xf32, #tpu.memory_space<vmem>>, vector<1x16x32xf32>
      %202 = vector.shape_cast %201 : vector<1x16x32xf32> to vector<16x32xf32>
      %203 = vector.shape_cast %200 : vector<16x32xf32> to vector<1x16x32xf32>
      tpu.vector_store %arg7[%c0_159, %c0_160, %c64_161], %203 {strides = array<i32>} : memref<1x16x128xf32, #tpu.memory_space<vmem>>, vector<1x16x32xf32>,
      %c3_162 = arith.constant 3 : index
      %c0_163 = arith.constant 0 : index
      %c0_164 = arith.constant 0 : index
      %204 = vector.load %arg9[%c3_162, %c0_163, %c0_164] : memref<4x16x1xf32, #tpu.memory_space<vmem>>, vector<1x16x1xf32>
      %205 = vector.shape_cast %204 : vector<1x16x1xf32> to vector<16x1xf32>
      %206 = tpu.reciprocal %205 {approx = true} : vector<16x1xf32> -> vector<16x1xf32>
      %c3_165 = arith.constant 3 : index
      %c0_166 = arith.constant 0 : index
      %c0_167 = arith.constant 0 : index
      %207 = vector.load %arg10[%c3_165, %c0_166, %c0_167] : memref<4x16x32xf32, #tpu.memory_space<vmem>>, vector<1x16x32xf32>
      %208 = vector.shape_cast %207 : vector<1x16x32xf32> to vector<16x32xf32>
      %209 = vector.broadcast %206 : vector<16x1xf32> to vector<16x32xf32>
      %210 = arith.mulf %208, %209 : vector<16x32xf32>
      %c0_168 = arith.constant 0 : index
      %c0_169 = arith.constant 0 : index
      %c96_170 = arith.constant 96 : index
      %211 = vector.load %arg7[%c0_168, %c0_169, %c96_170] : memref<1x16x128xf32, #tpu.memory_space<vmem>>, vector<1x16x32xf32>
      %212 = vector.shape_cast %211 : vector<1x16x32xf32> to vector<16x32xf32>
      %213 = vector.shape_cast %210 : vector<16x32xf32> to vector<1x16x32xf32>
      tpu.vector_store %arg7[%c0_168, %c0_169, %c96_170], %213 {strides = array<i32>} : memref<1x16x128xf32, #tpu.memory_space<vmem>>, vector<1x16x32xf32>,
    } else {
    }
    return
  }
  func.func @transform_0(%arg0: i32, %arg1: i32, %arg2: i32, %arg3: i32) -> (i32, i32, i32) {
    %c0_i32 = arith.constant 0 : i32
    return %arg0, %arg2, %arg1 : i32, i32, i32
  }
  func.func @transform_1(%arg0: i32, %arg1: i32, %arg2: i32, %arg3: i32) -> (i32, i32, i32) {
    %c0_i32 = arith.constant 0 : i32
    return %arg0, %arg3, %arg1 : i32, i32, i32
  }
  func.func @transform_2(%arg0: i32, %arg1: i32, %arg2: i32, %arg3: i32) -> (i32, i32, i32) {
    %c0_i32 = arith.constant 0 : i32
    return %arg0, %arg3, %arg1 : i32, i32, i32
  }
  func.func @transform_3(%arg0: i32, %arg1: i32, %arg2: i32, %arg3: i32) -> (i32, i32, i32) {
    %c0_i32 = arith.constant 0 : i32
    return %arg0, %arg2, %arg1 : i32, i32, i32
  }
}

</mosaic_0001>

<llo_original>
// kernel: tpu_custom_call.1
$region0: #{tpu_custom_call.1}
  #allocation0 [shape = 'u32[]', space=smem, size = 0x4, offset = 0x4, fixed_abs, tag = 'smem constant byte address 0x4 - core index']
  #allocation1 [shape = 'u32[72,128]{1,0:T(1,128)}', space=vmem, size = 0x9000, scoped, tag = 'internal scratch']
  #allocation2 [shape = 'f32[4,16,1]{2,1,0:T(8,128)}', space=vmem, size = 0x8000, scoped, tag = 'scratch operand']
  #allocation3 [shape = 'f32[4,16,1]{2,1,0:T(8,128)}', space=vmem, size = 0x8000, scoped, tag = 'scratch operand']
  #allocation4 [shape = 'f32[4,16,32]{2,1,0:T(8,128)}', space=vmem, size = 0x8000, scoped, tag = 'scratch operand']
  #allocation5 [shape = 'f32[16,33]{1,0:T(8,128)}', space=vmem, size = 0x2000, scoped, tag = 'scratch operand']
  %s0 = inlined_call_operand.hbm [shape: f32[2,16,128], index: 0, kind: input, shape index: {}]
  %s1 = inlined_call_operand.hbm [shape: f32[2,16,128], index: 1, kind: input, shape index: {}]
  %s2 = inlined_call_operand.hbm [shape: f32[2,16,128], index: 2, kind: input, shape index: {}]
  %s3 = inlined_call_operand.hbm [shape: f32[2,16,128], index: 3, kind: output, shape index: {}]
  %s4 = sld [smem:[#allocation0]]
  $region65: #{tpu_custom_call.1} parent=0
    _
  %s6 = ssub.s32 1, %s4
  %s7 = scalar_select 0, %s6, %s4
  $region1: #{tpu_custom_call.1} parent=0
    #allocation6 [shape = 'u8[16384]{0}', space=vmem, size = 0x4000, scoped, tag = 'input window, operand 0']
    #allocation7 [shape = 's32[2]{0}', space=sflag, size = 0x8, scoped, tag = 'scoped memory for tpu_custom_call.1']
    #allocation8 [shape = 's32[2]{0}', space=sflag, size = 0x8, scoped, tag = 'scoped memory for tpu_custom_call.1']
    #allocation9 [shape = 'u8[16384]{0}', space=vmem, size = 0x4000, scoped, tag = 'input window, operand 1']
    #allocation10 [shape = 's32[2]{0}', space=sflag, size = 0x8, scoped, tag = 'scoped memory for tpu_custom_call.1']
    #allocation11 [shape = 'u8[16384]{0}', space=vmem, size = 0x4000, scoped, tag = 'input window, operand 2']
    #allocation12 [shape = 'u8[16384]{0}', space=vmem, size = 0x4000, scoped, tag = 'output window, operand 0']
    %8 = vsyncpa [#allocation7], 0
    %s9 = scalar_lea.sflag [#allocation7], 1
    %10 = vsyncpa %s9, 0
    %11 = vsyncpa [#allocation10], 0
    %s12 = scalar_lea.sflag [#allocation10], 1
    %13 = vsyncpa %s12, 0
    %14 = vsyncpa [#allocation8], 0
    %s15 = scalar_lea.sflag [#allocation8], 1
    %16 = vsyncpa %s15, 0
    loop: start=0, step=1, limit=4
    $region2: #{tpu_custom_call.1} parent=1 // loop_pre_header
      _
    $region3: #{tpu_custom_call.1} parent=1 // loop_header
      %s18 = sphi 0, %s22
      %p19 = scmp.ge.s32.totalorder %s18, 4
      %s25 = sphi 0, %s51
      %s26 = sphi 0, %s47
      %s27 = sphi 0, %s43
      %s28 = sphi 0, %s39
      %s29 = sphi 0, %s25
      %s30 = sphi 0, %s26
      %s31 = sphi 0, %s27
      %s32 = sphi 0, %s28
      %s33 = sphi 0, %s29
      %s34 = sphi 0, %s30
      %s35 = sphi 0, %s31
      %s36 = sphi 0, %s32
      %s58 = sphi 0, %s60
      %s61 = sphi 0, %s58
      %s62 = sphi 0, %s61
      %s78 = sphi 0, %s62
      %s88 = sphi 0, %s90
      %s91 = sphi 0, %s88
      %s92 = sphi 0, %s91
      %s108 = sphi 0, %s92
      %s118 = sphi 0, %s120
      %s121 = sphi 0, %s118
      %s122 = sphi 0, %s121
      %s138 = sphi 0, %s122
      %s148 = sphi 0, %s150
      %s151 = sphi 0, %s148
      %s152 = sphi 0, %s151
      %s168 = sphi 0, %s152
    $region4: #{tpu_custom_call.1} parent=1 // loop_header_branch
      %21 = sbr.rel (%p19) target = $region8
    $region5: #{tpu_custom_call.1} parent=1 // loop_body
      %s23 = ssub.s32 %s18, 1
      %s24 = ssub.s32 %s18, 2
      %s37 = sadd.s32 1, %s28
      %p38 = scmp.ge.s32.totalorder %s37, 1
      %s39 = scalar_select %p38, 0, %s37
      %s40 = sadd.s32 1, %s27
      %s41 = scalar_select %p38, %s40, %s27
      %p42 = scmp.ge.s32.totalorder %s41, 1
      %s43 = scalar_select %p42, 0, %s41
      %s44 = sadd.s32 1, %s26
      %s45 = scalar_select %p42, %s44, %s26
      %p46 = scmp.ge.s32.totalorder %s45, 1
      %s47 = scalar_select %p46, 0, %s45
      %s48 = sadd.s32 1, %s25
      %s49 = scalar_select %p46, %s48, %s25
      %p50 = scmp.ge.s32.totalorder %s49, 2
      %s51 = scalar_select %p50, 0, %s49
      %s52 = ssub.s32 %s25, %s51
      %s53 = ssub.s32 %s27, %s43
      %s54 = sor.u32 %s52, %s53
      %s55 = ssub.s32 %s26, %s47
      %s56 = sor.u32 %s54, %s55
      %p57 = scmp.eq.s32.totalorder %s56, 0
      %s59 = sadd.s32 %s58, 1
      %s60 = scalar_select %p57, %s58, %s59
      %p63 = pneg %p57
      %p64 = scmp.eq.s32.totalorder %s18, 1
      %p65 = por %p63, %p64
      %p66 = scmp.ne.s32.totalorder %s58, %s61
      %p67 = scmp.eq.s32.totalorder %s18, 0
      %p68 = por %p66, %p67
      %p69 = scmp.ne.s32.totalorder %s58, %s61
      %p70 = scmp.eq.s32.totalorder %s23, 1
      %p71 = por %p69, %p70
      %p72 = scmp.ne.s32.totalorder %s61, %s62
      %p73 = scmp.eq.s32.totalorder %s23, 0
      %p74 = por %p72, %p73
      %p75 = scmp.ne.s32.totalorder %s61, %s62
      %p76 = scmp.eq.s32.totalorder %s24, 1
      %p77 = por %p75, %p76
      %p79 = scmp.ne.s32.totalorder %s62, %s78
      %p80 = scmp.eq.s32.totalorder %s24, 0
      %p81 = por %p79, %p80
      %s82 = ssub.s32 %s25, %s51
      %s83 = ssub.s32 %s28, %s39
      %s84 = sor.u32 %s82, %s83
      %s85 = ssub.s32 %s26, %s47
      %s86 = sor.u32 %s84, %s85
      %p87 = scmp.eq.s32.totalorder %s86, 0
      %s89 = sadd.s32 %s88, 1
      %s90 = scalar_select %p87, %s88, %s89
      %p93 = pneg %p87
      %p94 = scmp.eq.s32.totalorder %s18, 1
      %p95 = por %p93, %p94
      %p96 = scmp.ne.s32.totalorder %s88, %s91
      %p97 = scmp.eq.s32.totalorder %s18, 0
      %p98 = por %p96, %p97
      %p99 = scmp.ne.s32.totalorder %s88, %s91
      %p100 = scmp.eq.s32.totalorder %s23, 1
      %p101 = por %p99, %p100
      %p102 = scmp.ne.s32.totalorder %s91, %s92
      %p103 = scmp.eq.s32.totalorder %s23, 0
      %p104 = por %p102, %p103
      %p105 = scmp.ne.s32.totalorder %s91, %s92
      %p106 = scmp.eq.s32.totalorder %s24, 1
      %p107 = por %p105, %p106
      %p109 = scmp.ne.s32.totalorder %s92, %s108
      %p110 = scmp.eq.s32.totalorder %s24, 0
      %p111 = por %p109, %p110
      %s112 = ssub.s32 %s25, %s51
      %s113 = ssub.s32 %s28, %s39
      %s114 = sor.u32 %s112, %s113
      %s115 = ssub.s32 %s26, %s47
      %s116 = sor.u32 %s114, %s115
      %p117 = scmp.eq.s32.totalorder %s116, 0
      %s119 = sadd.s32 %s118, 1
      %s120 = scalar_select %p117, %s118, %s119
      %p123 = pneg %p117
      %p124 = scmp.eq.s32.totalorder %s18, 1
      %p125 = por %p123, %p124
      %p126 = scmp.ne.s32.totalorder %s118, %s121
      %p127 = scmp.eq.s32.totalorder %s18, 0
      %p128 = por %p126, %p127
      %p129 = scmp.ne.s32.totalorder %s118, %s121
      %p130 = scmp.eq.s32.totalorder %s23, 1
      %p131 = por %p129, %p130
      %p132 = scmp.ne.s32.totalorder %s121, %s122
      %p133 = scmp.eq.s32.totalorder %s23, 0
      %p134 = por %p132, %p133
      %p135 = scmp.ne.s32.totalorder %s121, %s122
      %p136 = scmp.eq.s32.totalorder %s24, 1
      %p137 = por %p135, %p136
      %p139 = scmp.ne.s32.totalorder %s122, %s138
      %p140 = scmp.eq.s32.totalorder %s24, 0
      %p141 = por %p139, %p140
      %s142 = ssub.s32 %s25, %s51
      %s143 = ssub.s32 %s27, %s43
      %s144 = sor.u32 %s142, %s143
      %s145 = ssub.s32 %s26, %s47
      %s146 = sor.u32 %s144, %s145
      %p147 = scmp.eq.s32.totalorder %s146, 0
      %s149 = sadd.s32 %s148, 1
      %s150 = scalar_select %p147, %s148, %s149
      %p153 = pneg %p147
      %p154 = scmp.eq.s32.totalorder %s18, 1
      %p155 = por %p153, %p154
      %p156 = scmp.ne.s32.totalorder %s148, %s151
      %p157 = scmp.eq.s32.totalorder %s18, 0
      %p158 = por %p156, %p157
      %p159 = scmp.ne.s32.totalorder %s148, %s151
      %p160 = scmp.eq.s32.totalorder %s23, 1
      %p161 = por %p159, %p160
      %p162 = scmp.ne.s32.totalorder %s151, %s152
      %p163 = scmp.eq.s32.totalorder %s23, 0
      %p164 = por %p162, %p163
      %p165 = scmp.ne.s32.totalorder %s151, %s152
      %p166 = scmp.eq.s32.totalorder %s24, 1
      %p167 = por %p165, %p166
      %p169 = scmp.ne.s32.totalorder %s152, %s168
      %p170 = scmp.eq.s32.totalorder %s24, 0
      %p171 = por %p169, %p170
      %p172 = scmp.le.s32.totalorder 1, %s18
      %p173 = scmp.lt.s32.totalorder %s18, 3
      %p174 = pnand %p172, %p173
      %p175 = pneg %p174
      // Predicated region
      $region9: #{tpu_custom_call.1} parent=5 // pred_check
        _
      $region10: #{tpu_custom_call.1} parent=5 // pred_check_branch
        %177 = sbr.rel (%p174) target = $region12
      $region11: #{tpu_custom_call.1} parent=5 // pred_region
        %s178 = ssub.s32 %s18, 1
      $region12: #{tpu_custom_call.1} parent=5 // pred_fallthru
        _
      %p179 = scmp.lt.s32.totalorder %s18, 2
      // Predicated region
      $region13: #{tpu_custom_call.1} parent=5 // pred_check
        %p180 = pneg %p179
      $region14: #{tpu_custom_call.1} parent=5 // pred_check_branch
        %182 = sbr.rel (%p180) target = $region16
      $region15: #{tpu_custom_call.1} parent=5 // pred_region
        // Predicated region
        $region17: #{tpu_custom_call.1} parent=15 // pred_check
          %p183 = pneg %p68
        $region18: #{tpu_custom_call.1} parent=15 // pred_check_branch
          %185 = sbr.rel (%p183) target = $region20
        $region19: #{tpu_custom_call.1} parent=15 // pred_region
          %s186 = sand.u32 %s58, 1
          %s187 = scalar_lea.sflag [#allocation7], %s186
          %s188 = sand.u32 %s58, 1
          %s189 = smul.addr %s188, 16
          %s190 = scalar_lea.vmem [#allocation6], %s189
          %s191 = smul.u32 2, %s27
          %193 = vsyncadd %s187, 0
          %s194 = sadd.s32 %s26, %s191
          %s195 = smul.addr %s25, 2
          %s196 = sadd.s32 %s194, %s195
          %s197 = smul.addr %s196, 8
          %s198 = scalar_lea.hbm %s0, %s197
          %s199 = sshll.u32 %s198, 4
          %s200 = int_to_ptr.hbm [resolvable:$true] %s199
          %s201 = sshll.u32 %s190, 4
          %s202 = int_to_ptr.vmem [resolvable:$true] %s201
          %207 = dma.hbm_to_vmem [thread:$0]  %s200, 256, %s202, %s187, 128, 128, 8
        $region20: #{tpu_custom_call.1} parent=15 // pred_fallthru
          _
        // Predicated region
        $region21: #{tpu_custom_call.1} parent=15 // pred_check
          %p208 = pneg %p98
        $region22: #{tpu_custom_call.1} parent=15 // pred_check_branch
          %210 = sbr.rel (%p208) target = $region24
        $region23: #{tpu_custom_call.1} parent=15 // pred_region
          %s211 = sand.u32 %s18, 1
          %s212 = scalar_lea.sflag [#allocation10], %s211
          %s213 = sand.u32 %s88, 1
          %s214 = smul.addr %s213, 16
          %s215 = scalar_lea.vmem [#allocation9], %s214
          %s216 = smul.u32 2, %s28
          %218 = vsyncadd %s212, 0
          %s219 = sadd.s32 %s26, %s216
          %s220 = smul.addr %s25, 2
          %s221 = sadd.s32 %s219, %s220
          %s222 = smul.addr %s221, 8
          %s223 = scalar_lea.hbm %s1, %s222
          %s224 = sshll.u32 %s223, 4
          %s225 = int_to_ptr.hbm [resolvable:$true] %s224
          %s226 = sshll.u32 %s215, 4
          %s227 = int_to_ptr.vmem [resolvable:$true] %s226
          %232 = dma.hbm_to_vmem [thread:$0]  %s225, 256, %s227, %s212, 128, 128, 8
        $region24: #{tpu_custom_call.1} parent=15 // pred_fallthru
          _
        // Predicated region
        $region25: #{tpu_custom_call.1} parent=15 // pred_check
          %p233 = pneg %p128
        $region26: #{tpu_custom_call.1} parent=15 // pred_check_branch
          %235 = sbr.rel (%p233) target = $region28
        $region27: #{tpu_custom_call.1} parent=15 // pred_region
          %s236 = sand.u32 %s18, 1
          %s237 = scalar_lea.sflag [#allocation10], %s236
          %s238 = sand.u32 %s118, 1
          %s239 = smul.addr %s238, 16
          %s240 = scalar_lea.vmem [#allocation11], %s239
          %s241 = smul.u32 2, %s28
          %243 = vsyncadd %s237, 0
          %s244 = sadd.s32 %s26, %s241
          %s245 = smul.addr %s25, 2
          %s246 = sadd.s32 %s244, %s245
          %s247 = smul.addr %s246, 8
          %s248 = scalar_lea.hbm %s2, %s247
          %s249 = sshll.u32 %s248, 4
          %s250 = int_to_ptr.hbm [resolvable:$true] %s249
          %s251 = sshll.u32 %s240, 4
          %s252 = int_to_ptr.vmem [resolvable:$true] %s251
          %257 = dma.hbm_to_vmem [thread:$0]  %s250, 256, %s252, %s237, 128, 128, 8
        $region28: #{tpu_custom_call.1} parent=15 // pred_fallthru
          _
      $region16: #{tpu_custom_call.1} parent=5 // pred_fallthru
        _
      %p258 = scmp.le.s32.totalorder 1, %s18
      %p259 = scmp.lt.s32.totalorder %s18, 3
      %p260 = pnand %p258, %p259
      %p261 = pneg %p260
      // Predicated region
      $region29: #{tpu_custom_call.1} parent=5 // pred_check
        _
      $region30: #{tpu_custom_call.1} parent=5 // pred_check_branch
        %263 = sbr.rel (%p260) target = $region32
      $region31: #{tpu_custom_call.1} parent=5 // pred_region
        %s264 = ssub.s32 %s18, 1
        %s265 = sand.u32 %s61, 1
        %s266 = scalar_lea.sflag [#allocation7], %s265
        %s267 = sand.u32 %s61, 1
        %s268 = smul.addr %s267, 16
        %s269 = scalar_lea.vmem [#allocation6], %s268
        // Predicated region
        $region33: #{tpu_custom_call.1} parent=31 // pred_check
          %p270 = pneg %p74
        $region34: #{tpu_custom_call.1} parent=31 // pred_check_branch
          %272 = sbr.rel (%p270) target = $region36
        $region35: #{tpu_custom_call.1} parent=31 // pred_region
          %274 = dma.done %s266, 256
        $region36: #{tpu_custom_call.1} parent=31 // pred_fallthru
          _
        %s275 = sand.u32 %s23, 1
        %s276 = scalar_lea.sflag [#allocation10], %s275
        %s277 = sand.u32 %s91, 1
        %s278 = smul.addr %s277, 16
        %s279 = scalar_lea.vmem [#allocation9], %s278
        // Predicated region
        $region37: #{tpu_custom_call.1} parent=31 // pred_check
          %p280 = pneg %p104
        $region38: #{tpu_custom_call.1} parent=31 // pred_check_branch
          %282 = sbr.rel (%p280) target = $region40
        $region39: #{tpu_custom_call.1} parent=31 // pred_region
          %284 = dma.done %s276, 256
        $region40: #{tpu_custom_call.1} parent=31 // pred_fallthru
          _
        %s285 = sand.u32 %s23, 1
        %s286 = scalar_lea.sflag [#allocation10], %s285
        %s287 = sand.u32 %s121, 1
        %s288 = smul.addr %s287, 16
        %s289 = scalar_lea.vmem [#allocation11], %s288
        // Predicated region
        $region41: #{tpu_custom_call.1} parent=31 // pred_check
          %p290 = pneg %p134
        $region42: #{tpu_custom_call.1} parent=31 // pred_check_branch
          %292 = sbr.rel (%p290) target = $region44
        $region43: #{tpu_custom_call.1} parent=31 // pred_region
          %294 = dma.done %s286, 256
        $region44: #{tpu_custom_call.1} parent=31 // pred_fallthru
          _
        %s295 = sand.u32 %s61, 1
        %s296 = scalar_lea.sflag [#allocation7], %s295
        %s297 = sand.u32 %s61, 1
        %s298 = smul.addr %s297, 16
        %s299 = scalar_lea.vmem [#allocation6], %s298
        %p300 = pneg %p74
        %p301 = pneg %p71
        %s302 = sand.u32 %s23, 1
        %s303 = scalar_lea.sflag [#allocation10], %s302
        %s304 = sand.u32 %s91, 1
        %s305 = smul.addr %s304, 16
        %s306 = scalar_lea.vmem [#allocation9], %s305
        %p307 = pneg %p104
        %p308 = pneg %p101
        %s309 = sand.u32 %s23, 1
        %s310 = scalar_lea.sflag [#allocation10], %s309
        %s311 = sand.u32 %s121, 1
        %s312 = smul.addr %s311, 16
        %s313 = scalar_lea.vmem [#allocation11], %s312
        %p314 = pneg %p134
        %p315 = pneg %p131
        %p316 = pneg %p164
        %p317 = pneg %p161
        %s318 = sand.u32 %s151, 1
        %s319 = scalar_lea.sflag [#allocation8], %s318
        %s320 = sand.u32 %s151, 1
        %s321 = smul.addr %s320, 16
        %s322 = scalar_lea.vmem [#allocation12], %s321
        %s323 = smul.u32 2, %s31
        %s324 = smul.u32 2, %s32
        %s325 = smul.u32 2, %s32
        %s326 = smul.u32 2, %s31
        %p327 = scmp.eq.s32.totalorder %s32, 0
        // Predicated region
        $region45: #{tpu_custom_call.1} parent=31 // pred_check
          %p328 = pneg %p327
        $region46: #{tpu_custom_call.1} parent=31 // pred_check_branch
          %330 = sbr.rel (%p328) target = $region48
        $region47: #{tpu_custom_call.1} parent=31 // pred_region
          %vm331 = vcmask 7168
          %332 = vst.msk [vmem:[#allocation2] sm:$0xff] %vm331, -inf
          %333 = vst.msk [vmem:[#allocation2 + $0x8] sm:$0xff] %vm331, -inf
          %334 = vst.msk [vmem:[#allocation2 + $0x10] sm:$0xff] %vm331, -inf
          %335 = vst.msk [vmem:[#allocation2 + $0x18] sm:$0xff] %vm331, -inf
          %336 = vst.msk [vmem:[#allocation2 + $0x20] sm:$0xff] %vm331, -inf
          %337 = vst.msk [vmem:[#allocation2 + $0x28] sm:$0xff] %vm331, -inf
          %338 = vst.msk [vmem:[#allocation2 + $0x30] sm:$0xff] %vm331, -inf
          %339 = vst.msk [vmem:[#allocation2 + $0x38] sm:$0xff] %vm331, -inf
          %340 = vst.msk [vmem:[#allocation3] sm:$0xff] %vm331, 0.0
          %341 = vst.msk [vmem:[#allocation3 + $0x8] sm:$0xff] %vm331, 0.0
          %342 = vst.msk [vmem:[#allocation3 + $0x10] sm:$0xff] %vm331, 0.0
          %343 = vst.msk [vmem:[#allocation3 + $0x18] sm:$0xff] %vm331, 0.0
          %344 = vst.msk [vmem:[#allocation3 + $0x20] sm:$0xff] %vm331, 0.0
          %345 = vst.msk [vmem:[#allocation3 + $0x28] sm:$0xff] %vm331, 0.0
          %346 = vst.msk [vmem:[#allocation3 + $0x30] sm:$0xff] %vm331, 0.0
          %347 = vst.msk [vmem:[#allocation3 + $0x38] sm:$0xff] %vm331, 0.0
          %vm348 = vcmask 261120
          %349 = vst.msk [vmem:[#allocation4] sm:$0xff] %vm348, 0.0
          %350 = vst.msk [vmem:[#allocation4 + $0x8] sm:$0xff] %vm348, 0.0
          %351 = vst.msk [vmem:[#allocation4 + $0x10] sm:$0xff] %vm348, 0.0
          %352 = vst.msk [vmem:[#allocation4 + $0x18] sm:$0xff] %vm348, 0.0
          %353 = vst.msk [vmem:[#allocation4 + $0x20] sm:$0xff] %vm348, 0.0
          %354 = vst.msk [vmem:[#allocation4 + $0x28] sm:$0xff] %vm348, 0.0
          %355 = vst.msk [vmem:[#allocation4 + $0x30] sm:$0xff] %vm348, 0.0
          %356 = vst.msk [vmem:[#allocation4 + $0x38] sm:$0xff] %vm348, 0.0
        $region48: #{tpu_custom_call.1} parent=31 // pred_fallthru
          _
        %v357 = vld [vmem:[%s269] sm:$0xff]
        %v358 = vld [vmem:[%s269 + $0x8] sm:$0xff]
        %v359 = vmul.f32 %v357, 0.17677669
        %v360 = vmul.f32 %v358, 0.17677669
        %v361 = vld [vmem:[%s279] sm:$0xff]
        %v362 = vld [vmem:[%s279 + $0x8] sm:$0xff]
        %vm363 = vcmask 261120
        %v365 = vsel %vm363, %v359, 0
        %v368 = vsel %vm363, %v360, 0
        %v371 = vsel %vm363, %v361, 0
        %v374 = vsel %vm363, %v362, 0
        %376 = vmatpush.xpose.msra.mxu0 0.0
        %377 = vmatpush.xpose.msra.mxu0 0.0
        %378 = vmatpush.xpose.msra.mxu0 0.0
        %379 = vmatpush.xpose.msra.mxu0 0.0
        %380 = vmatpush.xpose.msra.mxu0 0.0
        %381 = vmatpush.xpose.msra.mxu0 0.0
        %382 = vmatpush.xpose.msra.mxu0 0.0
        %383 = vmatpush.xpose.msra.mxu0 0.0
        %384 = vmatpush.xpose.msra.mxu0 0.0
        %385 = vmatpush.xpose.msra.mxu0 0.0
        %386 = vmatpush.xpose.msra.mxu0 0.0
        %387 = vmatpush.xpose.msra.mxu0 0.0
        %388 = vmatpush.xpose.msra.mxu0 0.0
        %389 = vmatpush.xpose.msra.mxu0 0.0
        %390 = vmatpush.xpose.msra.mxu0 %v374
        %391 = vmatpush.xpose.msra.mxu0 %v371
        %392 = vmatmul.f32.gmra.mxu0 %v365
        %v393 = vpop.f32.mrf.mxu0
        %v394 = vadd.f32 0.0, %v393
        %395 = vmatmul.f32.gmra.mxu0 %v368
        %v396 = vpop.f32.mrf.mxu0
        %v397 = vadd.f32 0.0, %v396
        %398 = vdwg.mxu0
        %v399 = vld [vmem:[#allocation2] sm:$0xff]
        %v400 = vld [vmem:[#allocation2 + $0x8] sm:$0xff]
        %vm401 = vcmask 130048
        %v402 = vsel %vm401, %v394, -inf
        %403 = vmax.xlane.f32.xlu0 %v402
        %v404 = vpop.xlane.xlu0 %403
        %v405 = vsel %vm401, %v397, -inf
        %406 = vmax.xlane.f32.xlu0 %v405
        %v407 = vpop.xlane.xlu0 %406
        %v408 = vmax.f32 %v399, %v404
        %v409 = vmax.f32 %v400, %v407
        %v410 = vsub.f32 %v399, %v408
        %v411 = vsub.f32 %v400, %v409
        %v412 = vmul.f32 %v410, 1.442695
        %v413 = vpow.pop %v412
        %v414 = vmul.f32 %v411, 1.442695
        %v415 = vpow.pop %v414
        %417 = vset.pattern.permute.xlu0 0
        %418 = vperm.xlu0 %417, %v408
        %v419 = vpop.permute.xlu0 %418
        %422 = vset.pattern.permute.xlu0 0
        %423 = vperm.xlu0 %422, %v409
        %v424 = vpop.permute.xlu0 %423
        %v426 = vsub.f32 %v394, %v419
        %v427 = vsub.f32 %v397, %v424
        %v428 = vmul.f32 %v426, 1.442695
        %v429 = vpow.pop %v428
        %v430 = vmul.f32 %v427, 1.442695
        %v431 = vpow.pop %v430
        %v432 = vld [vmem:[%s289] sm:$0xff]
        %v433 = vld [vmem:[%s289 + $0x8] sm:$0xff]
        %434 = vst.msk [vmem:[#allocation5] sm:$0xff] %vm363, %v432
        %435 = vst.msk [vmem:[#allocation5 + $0x8] sm:$0xff] %vm363, %v433
        %vm436 = vcmask 269568
        %437 = vst.msk [vmem:[#allocation5] sm:$0xff] %vm436, 1.0
        %438 = vst.msk [vmem:[#allocation5 + $0x8] sm:$0xff] %vm436, 1.0
        %v439 = vld [vmem:[#allocation5] sm:$0xff]
        %v440 = vld [vmem:[#allocation5 + $0x8] sm:$0xff]
        %v442 = vsel %vm401, %v429, 0
        %v445 = vsel %vm401, %v431, 0
        %447 = vmatpush.msra.mxu0 0.0
        %448 = vmatpush.msra.mxu0 0.0
        %449 = vmatpush.msra.mxu0 0.0
        %450 = vmatpush.msra.mxu0 0.0
        %451 = vmatpush.msra.mxu0 0.0
        %452 = vmatpush.msra.mxu0 0.0
        %453 = vmatpush.msra.mxu0 0.0
        %454 = vmatpush.msra.mxu0 0.0
        %455 = vmatpush.msra.mxu0 0.0
        %456 = vmatpush.msra.mxu0 0.0
        %457 = vmatpush.msra.mxu0 0.0
        %458 = vmatpush.msra.mxu0 0.0
        %459 = vmatpush.msra.mxu0 0.0
        %460 = vmatpush.msra.mxu0 0.0
        %461 = vmatpush.msra.mxu0 %v440
        %462 = vmatpush.msra.mxu0 %v439
        %463 = vmatmul.f32.gmra.mxu0 %v442
        %v464 = vpop.f32.mrf.mxu0
        %v465 = vadd.f32 0.0, %v464
        %466 = vmatmul.f32.gmra.mxu0 %v445
        %v467 = vpop.f32.mrf.mxu0
        %v468 = vadd.f32 0.0, %v467
        %469 = vdwg.mxu0
        %vm470 = vcmask 7168
        %471 = vst.msk [vmem:[#allocation2] sm:$0xff] %vm470, %v408
        %472 = vst.msk [vmem:[#allocation2 + $0x8] sm:$0xff] %vm470, %v409
        %v473 = vld [vmem:[#allocation3] sm:$0xff]
        %v474 = vld [vmem:[#allocation3 + $0x8] sm:$0xff]
        %v475 = vmul.f32 %v413, %v473
        %v476 = vmul.f32 %v415, %v474
        %479 = vrot.lane.b32.xlu0 %v465, 96
        %v480 = vpop.permute.xlu0 %479
        %481 = vrot.lane.b32.xlu0 %v468, 96
        %v482 = vpop.permute.xlu0 %481
        %v485 = vadd.f32 %v475, %v480
        %v486 = vadd.f32 %v476, %v482
        %487 = vst.msk [vmem:[#allocation3] sm:$0xff] %vm470, %v485
        %488 = vst.msk [vmem:[#allocation3 + $0x8] sm:$0xff] %vm470, %v486
        %v489 = vld [vmem:[#allocation4] sm:$0xff]
        %v490 = vld [vmem:[#allocation4 + $0x8] sm:$0xff]
        %492 = vset.pattern.permute.xlu0 0
        %493 = vperm.xlu0 %492, %v413
        %v494 = vpop.permute.xlu0 %493
        %497 = vset.pattern.permute.xlu0 0
        %498 = vperm.xlu0 %497, %v415
        %v499 = vpop.permute.xlu0 %498
        %v501 = vmul.f32 %v494, %v489
        %v502 = vmul.f32 %v499, %v490
        %v503 = vadd.f32 %v501, %v465
        %v504 = vadd.f32 %v502, %v468
        %505 = vst.msk [vmem:[#allocation4] sm:$0xff] %vm363, %v503
        %506 = vst.msk [vmem:[#allocation4 + $0x8] sm:$0xff] %vm363, %v504
        %v507 = vld [vmem:[%s279] sm:$0xff]
        %v508 = vld [vmem:[%s279 + $0x8] sm:$0xff]
        %509 = vrot.lane.b32.xlu0 %v359, 96
        %v510 = vpop.permute.xlu0 %509
        %511 = vrot.lane.b32.xlu0 %v360, 96
        %v512 = vpop.permute.xlu0 %511
        %515 = vrot.lane.b32.xlu0 %v507, 96
        %v516 = vpop.permute.xlu0 %515
        %517 = vrot.lane.b32.xlu0 %v508, 96
        %v518 = vpop.permute.xlu0 %517
        %v519 = vsel %vm363, %v510, 0
        %v521 = vsel %vm363, %v512, 0
        %v523 = vsel %vm363, %v516, 0
        %v525 = vsel %vm363, %v518, 0
        %527 = vmatpush.xpose.msra.mxu0 0.0
        %528 = vmatpush.xpose.msra.mxu0 0.0
        %529 = vmatpush.xpose.msra.mxu0 0.0
        %530 = vmatpush.xpose.msra.mxu0 0.0
        %531 = vmatpush.xpose.msra.mxu0 0.0
        %532 = vmatpush.xpose.msra.mxu0 0.0
        %533 = vmatpush.xpose.msra.mxu0 0.0
        %534 = vmatpush.xpose.msra.mxu0 0.0
        %535 = vmatpush.xpose.msra.mxu0 0.0
        %536 = vmatpush.xpose.msra.mxu0 0.0
        %537 = vmatpush.xpose.msra.mxu0 0.0
        %538 = vmatpush.xpose.msra.mxu0 0.0
        %539 = vmatpush.xpose.msra.mxu0 0.0
        %540 = vmatpush.xpose.msra.mxu0 0.0
        %541 = vmatpush.xpose.msra.mxu0 %v525
        %542 = vmatpush.xpose.msra.mxu0 %v523
        %543 = vmatmul.f32.gmra.mxu0 %v519
        %v544 = vpop.f32.mrf.mxu0
        %v545 = vadd.f32 0.0, %v544
        %546 = vmatmul.f32.gmra.mxu0 %v521
        %v547 = vpop.f32.mrf.mxu0
        %v548 = vadd.f32 0.0, %v547
        %549 = vdwg.mxu0
        %s550 = scalar_lea.vmem [#allocation2], 16
        %v551 = vld [vmem:[%s550] sm:$0xff]
        %v552 = vld [vmem:[%s550 + $0x8] sm:$0xff]
        %v553 = vsel %vm401, %v545, -inf
        %554 = vmax.xlane.f32.xlu0 %v553
        %v555 = vpop.xlane.xlu0 %554
        %v556 = vsel %vm401, %v548, -inf
        %557 = vmax.xlane.f32.xlu0 %v556
        %v558 = vpop.xlane.xlu0 %557
        %v559 = vmax.f32 %v551, %v555
        %v560 = vmax.f32 %v552, %v558
        %v561 = vsub.f32 %v551, %v559
        %v562 = vsub.f32 %v552, %v560
        %v563 = vmul.f32 %v561, 1.442695
        %v564 = vpow.pop %v563
        %v565 = vmul.f32 %v562, 1.442695
        %v566 = vpow.pop %v565
        %568 = vset.pattern.permute.xlu0 0
        %569 = vperm.xlu0 %568, %v559
        %v570 = vpop.permute.xlu0 %569
        %573 = vset.pattern.permute.xlu0 0
        %574 = vperm.xlu0 %573, %v560
        %v575 = vpop.permute.xlu0 %574
        %v577 = vsub.f32 %v545, %v570
        %v578 = vsub.f32 %v548, %v575
        %v579 = vmul.f32 %v577, 1.442695
        %v580 = vpow.pop %v579
        %v581 = vmul.f32 %v578, 1.442695
        %v582 = vpow.pop %v581
        %v583 = vld [vmem:[%s289] sm:$0xff]
        %v584 = vld [vmem:[%s289 + $0x8] sm:$0xff]
        %587 = vrot.lane.b32.xlu0 %v583, 96
        %v588 = vpop.permute.xlu0 %587
        %589 = vrot.lane.b32.xlu0 %v584, 96
        %v590 = vpop.permute.xlu0 %589
        %593 = vst.msk [vmem:[#allocation5] sm:$0xff] %vm363, %v588
        %594 = vst.msk [vmem:[#allocation5 + $0x8] sm:$0xff] %vm363, %v590
        %595 = vst.msk [vmem:[#allocation5] sm:$0xff] %vm436, 1.0
        %596 = vst.msk [vmem:[#allocation5 + $0x8] sm:$0xff] %vm436, 1.0
        %v597 = vld [vmem:[#allocation5] sm:$0xff]
        %v598 = vld [vmem:[#allocation5 + $0x8] sm:$0xff]
        %v600 = vsel %vm401, %v580, 0
        %v603 = vsel %vm401, %v582, 0
        %605 = vmatpush.msra.mxu0 0.0
        %606 = vmatpush.msra.mxu0 0.0
        %607 = vmatpush.msra.mxu0 0.0
        %608 = vmatpush.msra.mxu0 0.0
        %609 = vmatpush.msra.mxu0 0.0
        %610 = vmatpush.msra.mxu0 0.0
        %611 = vmatpush.msra.mxu0 0.0
        %612 = vmatpush.msra.mxu0 0.0
        %613 = vmatpush.msra.mxu0 0.0
        %614 = vmatpush.msra.mxu0 0.0
        %615 = vmatpush.msra.mxu0 0.0
        %616 = vmatpush.msra.mxu0 0.0
        %617 = vmatpush.msra.mxu0 0.0
        %618 = vmatpush.msra.mxu0 0.0
        %619 = vmatpush.msra.mxu0 %v598
        %620 = vmatpush.msra.mxu0 %v597
        %621 = vmatmul.f32.gmra.mxu0 %v600
        %v622 = vpop.f32.mrf.mxu0
        %v623 = vadd.f32 0.0, %v622
        %624 = vmatmul.f32.gmra.mxu0 %v603
        %v625 = vpop.f32.mrf.mxu0
        %v626 = vadd.f32 0.0, %v625
        %627 = vdwg.mxu0
        %628 = vst.msk [vmem:[%s550] sm:$0xff] %vm470, %v559
        %629 = vst.msk [vmem:[%s550 + $0x8] sm:$0xff] %vm470, %v560
        %s630 = scalar_lea.vmem [#allocation3], 16
        %v631 = vld [vmem:[%s630] sm:$0xff]
        %v632 = vld [vmem:[%s630 + $0x8] sm:$0xff]
        %v633 = vmul.f32 %v564, %v631
        %v634 = vmul.f32 %v566, %v632
        %637 = vrot.lane.b32.xlu0 %v623, 96
        %v638 = vpop.permute.xlu0 %637
        %639 = vrot.lane.b32.xlu0 %v626, 96
        %v640 = vpop.permute.xlu0 %639
        %v643 = vadd.f32 %v633, %v638
        %v644 = vadd.f32 %v634, %v640
        %645 = vst.msk [vmem:[%s630] sm:$0xff] %vm470, %v643
        %646 = vst.msk [vmem:[%s630 + $0x8] sm:$0xff] %vm470, %v644
        %s647 = scalar_lea.vmem [#allocation4], 16
        %v648 = vld [vmem:[%s647] sm:$0xff]
        %v649 = vld [vmem:[%s647 + $0x8] sm:$0xff]
        %651 = vset.pattern.permute.xlu0 0
        %652 = vperm.xlu0 %651, %v564
        %v653 = vpop.permute.xlu0 %652
        %656 = vset.pattern.permute.xlu0 0
        %657 = vperm.xlu0 %656, %v566
        %v658 = vpop.permute.xlu0 %657
        %v660 = vmul.f32 %v653, %v648
        %v661 = vmul.f32 %v658, %v649
        %v662 = vadd.f32 %v660, %v623
        %v663 = vadd.f32 %v661, %v626
        %664 = vst.msk [vmem:[%s647] sm:$0xff] %vm363, %v662
        %665 = vst.msk [vmem:[%s647 + $0x8] sm:$0xff] %vm363, %v663
        %v666 = vld [vmem:[%s279] sm:$0xff]
        %v667 = vld [vmem:[%s279 + $0x8] sm:$0xff]
        %668 = vrot.lane.b32.xlu0 %v359, 64
        %v669 = vpop.permute.xlu0 %668
        %670 = vrot.lane.b32.xlu0 %v360, 64
        %v671 = vpop.permute.xlu0 %670
        %674 = vrot.lane.b32.xlu0 %v666, 64
        %v675 = vpop.permute.xlu0 %674
        %676 = vrot.lane.b32.xlu0 %v667, 64
        %v677 = vpop.permute.xlu0 %676
        %v678 = vsel %vm363, %v669, 0
        %v680 = vsel %vm363, %v671, 0
        %v682 = vsel %vm363, %v675, 0
        %v684 = vsel %vm363, %v677, 0
        %686 = vmatpush.xpose.msra.mxu0 0.0
        %687 = vmatpush.xpose.msra.mxu0 0.0
        %688 = vmatpush.xpose.msra.mxu0 0.0
        %689 = vmatpush.xpose.msra.mxu0 0.0
        %690 = vmatpush.xpose.msra.mxu0 0.0
        %691 = vmatpush.xpose.msra.mxu0 0.0
        %692 = vmatpush.xpose.msra.mxu0 0.0
        %693 = vmatpush.xpose.msra.mxu0 0.0
        %694 = vmatpush.xpose.msra.mxu0 0.0
        %695 = vmatpush.xpose.msra.mxu0 0.0
        %696 = vmatpush.xpose.msra.mxu0 0.0
        %697 = vmatpush.xpose.msra.mxu0 0.0
        %698 = vmatpush.xpose.msra.mxu0 0.0
        %699 = vmatpush.xpose.msra.mxu0 0.0
        %700 = vmatpush.xpose.msra.mxu0 %v684
        %701 = vmatpush.xpose.msra.mxu0 %v682
        %702 = vmatmul.f32.gmra.mxu0 %v678
        %v703 = vpop.f32.mrf.mxu0
        %v704 = vadd.f32 0.0, %v703
        %705 = vmatmul.f32.gmra.mxu0 %v680
        %v706 = vpop.f32.mrf.mxu0
        %v707 = vadd.f32 0.0, %v706
        %708 = vdwg.mxu0
        %s709 = scalar_lea.vmem [#allocation2], 32
        %v710 = vld [vmem:[%s709] sm:$0xff]
        %v711 = vld [vmem:[%s709 + $0x8] sm:$0xff]
        %v712 = vsel %vm401, %v704, -inf
        %713 = vmax.xlane.f32.xlu0 %v712
        %v714 = vpop.xlane.xlu0 %713
        %v715 = vsel %vm401, %v707, -inf
        %716 = vmax.xlane.f32.xlu0 %v715
        %v717 = vpop.xlane.xlu0 %716
        %v718 = vmax.f32 %v710, %v714
        %v719 = vmax.f32 %v711, %v717
        %v720 = vsub.f32 %v710, %v718
        %v721 = vsub.f32 %v711, %v719
        %v722 = vmul.f32 %v720, 1.442695
        %v723 = vpow.pop %v722
        %v724 = vmul.f32 %v721, 1.442695
        %v725 = vpow.pop %v724
        %727 = vset.pattern.permute.xlu0 0
        %728 = vperm.xlu0 %727, %v718
        %v729 = vpop.permute.xlu0 %728
        %732 = vset.pattern.permute.xlu0 0
        %733 = vperm.xlu0 %732, %v719
        %v734 = vpop.permute.xlu0 %733
        %v736 = vsub.f32 %v704, %v729
        %v737 = vsub.f32 %v707, %v734
        %v738 = vmul.f32 %v736, 1.442695
        %v739 = vpow.pop %v738
        %v740 = vmul.f32 %v737, 1.442695
        %v741 = vpow.pop %v740
        %v742 = vld [vmem:[%s289] sm:$0xff]
        %v743 = vld [vmem:[%s289 + $0x8] sm:$0xff]
        %746 = vrot.lane.b32.xlu0 %v742, 64
        %v747 = vpop.permute.xlu0 %746
        %748 = vrot.lane.b32.xlu0 %v743, 64
        %v749 = vpop.permute.xlu0 %748
        %752 = vst.msk [vmem:[#allocation5] sm:$0xff] %vm363, %v747
        %753 = vst.msk [vmem:[#allocation5 + $0x8] sm:$0xff] %vm363, %v749
        %754 = vst.msk [vmem:[#allocation5] sm:$0xff] %vm436, 1.0
        %755 = vst.msk [vmem:[#allocation5 + $0x8] sm:$0xff] %vm436, 1.0
        %v756 = vld [vmem:[#allocation5] sm:$0xff]
        %v757 = vld [vmem:[#allocation5 + $0x8] sm:$0xff]
        %v759 = vsel %vm401, %v739, 0
        %v762 = vsel %vm401, %v741, 0
        %764 = vmatpush.msra.mxu0 0.0
        %765 = vmatpush.msra.mxu0 0.0
        %766 = vmatpush.msra.mxu0 0.0
        %767 = vmatpush.msra.mxu0 0.0
        %768 = vmatpush.msra.mxu0 0.0
        %769 = vmatpush.msra.mxu0 0.0
        %770 = vmatpush.msra.mxu0 0.0
        %771 = vmatpush.msra.mxu0 0.0
        %772 = vmatpush.msra.mxu0 0.0
        %773 = vmatpush.msra.mxu0 0.0
        %774 = vmatpush.msra.mxu0 0.0
        %775 = vmatpush.msra.mxu0 0.0
        %776 = vmatpush.msra.mxu0 0.0
        %777 = vmatpush.msra.mxu0 0.0
        %778 = vmatpush.msra.mxu0 %v757
        %779 = vmatpush.msra.mxu0 %v756
        %780 = vmatmul.f32.gmra.mxu0 %v759
        %v781 = vpop.f32.mrf.mxu0
        %v782 = vadd.f32 0.0, %v781
        %783 = vmatmul.f32.gmra.mxu0 %v762
        %v784 = vpop.f32.mrf.mxu0
        %v785 = vadd.f32 0.0, %v784
        %786 = vdwg.mxu0
        %787 = vst.msk [vmem:[%s709] sm:$0xff] %vm470, %v718
        %788 = vst.msk [vmem:[%s709 + $0x8] sm:$0xff] %vm470, %v719
        %s789 = scalar_lea.vmem [#allocation3], 32
        %v790 = vld [vmem:[%s789] sm:$0xff]
        %v791 = vld [vmem:[%s789 + $0x8] sm:$0xff]
        %v792 = vmul.f32 %v723, %v790
        %v793 = vmul.f32 %v725, %v791
        %796 = vrot.lane.b32.xlu0 %v782, 96
        %v797 = vpop.permute.xlu0 %796
        %798 = vrot.lane.b32.xlu0 %v785, 96
        %v799 = vpop.permute.xlu0 %798
        %v802 = vadd.f32 %v792, %v797
        %v803 = vadd.f32 %v793, %v799
        %804 = vst.msk [vmem:[%s789] sm:$0xff] %vm470, %v802
        %805 = vst.msk [vmem:[%s789 + $0x8] sm:$0xff] %vm470, %v803
        %s806 = scalar_lea.vmem [#allocation4], 32
        %v807 = vld [vmem:[%s806] sm:$0xff]
        %v808 = vld [vmem:[%s806 + $0x8] sm:$0xff]
        %810 = vset.pattern.permute.xlu0 0
        %811 = vperm.xlu0 %810, %v723
        %v812 = vpop.permute.xlu0 %811
        %815 = vset.pattern.permute.xlu0 0
        %816 = vperm.xlu0 %815, %v725
        %v817 = vpop.permute.xlu0 %816
        %v819 = vmul.f32 %v812, %v807
        %v820 = vmul.f32 %v817, %v808
        %v821 = vadd.f32 %v819, %v782
        %v822 = vadd.f32 %v820, %v785
        %823 = vst.msk [vmem:[%s806] sm:$0xff] %vm363, %v821
        %824 = vst.msk [vmem:[%s806 + $0x8] sm:$0xff] %vm363, %v822
        %v825 = vld [vmem:[%s279] sm:$0xff]
        %v826 = vld [vmem:[%s279 + $0x8] sm:$0xff]
        %827 = vrot.lane.b32.xlu0 %v359, 32
        %v828 = vpop.permute.xlu0 %827
        %829 = vrot.lane.b32.xlu0 %v360, 32
        %v830 = vpop.permute.xlu0 %829
        %833 = vrot.lane.b32.xlu0 %v825, 32
        %v834 = vpop.permute.xlu0 %833
        %835 = vrot.lane.b32.xlu0 %v826, 32
        %v836 = vpop.permute.xlu0 %835
        %v837 = vsel %vm363, %v828, 0
        %v839 = vsel %vm363, %v830, 0
        %v841 = vsel %vm363, %v834, 0
        %v843 = vsel %vm363, %v836, 0
        %845 = vmatpush.xpose.msra.mxu0 0.0
        %846 = vmatpush.xpose.msra.mxu0 0.0
        %847 = vmatpush.xpose.msra.mxu0 0.0
        %848 = vmatpush.xpose.msra.mxu0 0.0
        %849 = vmatpush.xpose.msra.mxu0 0.0
        %850 = vmatpush.xpose.msra.mxu0 0.0
        %851 = vmatpush.xpose.msra.mxu0 0.0
        %852 = vmatpush.xpose.msra.mxu0 0.0
        %853 = vmatpush.xpose.msra.mxu0 0.0
        %854 = vmatpush.xpose.msra.mxu0 0.0
        %855 = vmatpush.xpose.msra.mxu0 0.0
        %856 = vmatpush.xpose.msra.mxu0 0.0
        %857 = vmatpush.xpose.msra.mxu0 0.0
        %858 = vmatpush.xpose.msra.mxu0 0.0
        %859 = vmatpush.xpose.msra.mxu0 %v843
        %860 = vmatpush.xpose.msra.mxu0 %v841
        %861 = vmatmul.f32.gmra.mxu0 %v837
        %v862 = vpop.f32.mrf.mxu0
        %v863 = vadd.f32 0.0, %v862
        %864 = vmatmul.f32.gmra.mxu0 %v839
        %v865 = vpop.f32.mrf.mxu0
        %v866 = vadd.f32 0.0, %v865
        %867 = vdwg.mxu0
        %s868 = scalar_lea.vmem [#allocation2], 48
        %v869 = vld [vmem:[%s868] sm:$0xff]
        %v870 = vld [vmem:[%s868 + $0x8] sm:$0xff]
        %v871 = vsel %vm401, %v863, -inf
        %872 = vmax.xlane.f32.xlu0 %v871
        %v873 = vpop.xlane.xlu0 %872
        %v874 = vsel %vm401, %v866, -inf
        %875 = vmax.xlane.f32.xlu0 %v874
        %v876 = vpop.xlane.xlu0 %875
        %v877 = vmax.f32 %v869, %v873
        %v878 = vmax.f32 %v870, %v876
        %v879 = vsub.f32 %v869, %v877
        %v880 = vsub.f32 %v870, %v878
        %v881 = vmul.f32 %v879, 1.442695
        %v882 = vpow.pop %v881
        %v883 = vmul.f32 %v880, 1.442695
        %v884 = vpow.pop %v883
        %886 = vset.pattern.permute.xlu0 0
        %887 = vperm.xlu0 %886, %v877
        %v888 = vpop.permute.xlu0 %887
        %891 = vset.pattern.permute.xlu0 0
        %892 = vperm.xlu0 %891, %v878
        %v893 = vpop.permute.xlu0 %892
        %v895 = vsub.f32 %v863, %v888
        %v896 = vsub.f32 %v866, %v893
        %v897 = vmul.f32 %v895, 1.442695
        %v898 = vpow.pop %v897
        %v899 = vmul.f32 %v896, 1.442695
        %v900 = vpow.pop %v899
        %v901 = vld [vmem:[%s289] sm:$0xff]
        %v902 = vld [vmem:[%s289 + $0x8] sm:$0xff]
        %905 = vrot.lane.b32.xlu0 %v901, 32
        %v906 = vpop.permute.xlu0 %905
        %907 = vrot.lane.b32.xlu0 %v902, 32
        %v908 = vpop.permute.xlu0 %907
        %911 = vst.msk [vmem:[#allocation5] sm:$0xff] %vm363, %v906
        %912 = vst.msk [vmem:[#allocation5 + $0x8] sm:$0xff] %vm363, %v908
        %913 = vst.msk [vmem:[#allocation5] sm:$0xff] %vm436, 1.0
        %914 = vst.msk [vmem:[#allocation5 + $0x8] sm:$0xff] %vm436, 1.0
        %v915 = vld [vmem:[#allocation5] sm:$0xff]
        %v916 = vld [vmem:[#allocation5 + $0x8] sm:$0xff]
        %v918 = vsel %vm401, %v898, 0
        %v921 = vsel %vm401, %v900, 0
        %923 = vmatpush.msra.mxu0 0.0
        %924 = vmatpush.msra.mxu0 0.0
        %925 = vmatpush.msra.mxu0 0.0
        %926 = vmatpush.msra.mxu0 0.0
        %927 = vmatpush.msra.mxu0 0.0
        %928 = vmatpush.msra.mxu0 0.0
        %929 = vmatpush.msra.mxu0 0.0
        %930 = vmatpush.msra.mxu0 0.0
        %931 = vmatpush.msra.mxu0 0.0
        %932 = vmatpush.msra.mxu0 0.0
        %933 = vmatpush.msra.mxu0 0.0
        %934 = vmatpush.msra.mxu0 0.0
        %935 = vmatpush.msra.mxu0 0.0
        %936 = vmatpush.msra.mxu0 0.0
        %937 = vmatpush.msra.mxu0 %v916
        %938 = vmatpush.msra.mxu0 %v915
        %939 = vmatmul.f32.gmra.mxu0 %v918
        %v940 = vpop.f32.mrf.mxu0
        %v941 = vadd.f32 0.0, %v940
        %942 = vmatmul.f32.gmra.mxu0 %v921
        %v943 = vpop.f32.mrf.mxu0
        %v944 = vadd.f32 0.0, %v943
        %945 = vdwg.mxu0
        %946 = vst.msk [vmem:[%s868] sm:$0xff] %vm470, %v877
        %947 = vst.msk [vmem:[%s868 + $0x8] sm:$0xff] %vm470, %v878
        %s948 = scalar_lea.vmem [#allocation3], 48
        %v949 = vld [vmem:[%s948] sm:$0xff]
        %v950 = vld [vmem:[%s948 + $0x8] sm:$0xff]
        %v951 = vmul.f32 %v882, %v949
        %v952 = vmul.f32 %v884, %v950
        %955 = vrot.lane.b32.xlu0 %v941, 96
        %v956 = vpop.permute.xlu0 %955
        %957 = vrot.lane.b32.xlu0 %v944, 96
        %v958 = vpop.permute.xlu0 %957
        %v961 = vadd.f32 %v951, %v956
        %v962 = vadd.f32 %v952, %v958
        %963 = vst.msk [vmem:[%s948] sm:$0xff] %vm470, %v961
        %964 = vst.msk [vmem:[%s948 + $0x8] sm:$0xff] %vm470, %v962
        %s965 = scalar_lea.vmem [#allocation4], 48
        %v966 = vld [vmem:[%s965] sm:$0xff]
        %v967 = vld [vmem:[%s965 + $0x8] sm:$0xff]
        %969 = vset.pattern.permute.xlu0 0
        %970 = vperm.xlu0 %969, %v882
        %v971 = vpop.permute.xlu0 %970
        %974 = vset.pattern.permute.xlu0 0
        %975 = vperm.xlu0 %974, %v884
        %v976 = vpop.permute.xlu0 %975
        %v978 = vmul.f32 %v971, %v966
        %v979 = vmul.f32 %v976, %v967
        %v980 = vadd.f32 %v978, %v941
        %v981 = vadd.f32 %v979, %v944
        %982 = vst.msk [vmem:[%s965] sm:$0xff] %vm363, %v980
        %983 = vst.msk [vmem:[%s965 + $0x8] sm:$0xff] %vm363, %v981
        // Predicated region
        $region49: #{tpu_custom_call.1} parent=31 // pred_check
          %p984 = pneg %p327
        $region50: #{tpu_custom_call.1} parent=31 // pred_check_branch
          %986 = sbr.rel (%p984) target = $region52
        $region51: #{tpu_custom_call.1} parent=31 // pred_region
          %v987 = vld [vmem:[#allocation3] sm:$0xff]
          %v988 = vld [vmem:[#allocation3 + $0x8] sm:$0xff]
          %v989 = vrcp.pop %v987
          %v990 = vrcp.pop %v988
          %v991 = vld [vmem:[#allocation4] sm:$0xff]
          %v992 = vld [vmem:[#allocation4 + $0x8] sm:$0xff]
          %994 = vset.pattern.permute.xlu0 0
          %995 = vperm.xlu0 %994, %v989
          %v996 = vpop.permute.xlu0 %995
          %999 = vset.pattern.permute.xlu0 0
          %1000 = vperm.xlu0 %999, %v990
          %v1001 = vpop.permute.xlu0 %1000
          %v1003 = vmul.f32 %v991, %v996
          %v1004 = vmul.f32 %v992, %v1001
          %1005 = vst.msk [vmem:[%s322] sm:$0xff] %vm363, %v1003
          %1006 = vst.msk [vmem:[%s322 + $0x8] sm:$0xff] %vm363, %v1004
          %v1007 = vld [vmem:[%s630] sm:$0xff]
          %v1008 = vld [vmem:[%s630 + $0x8] sm:$0xff]
          %v1009 = vrcp.pop %v1007
          %v1010 = vrcp.pop %v1008
          %v1011 = vld [vmem:[%s647] sm:$0xff]
          %v1012 = vld [vmem:[%s647 + $0x8] sm:$0xff]
          %1014 = vset.pattern.permute.xlu0 0
          %1015 = vperm.xlu0 %1014, %v1009
          %v1016 = vpop.permute.xlu0 %1015
          %1019 = vset.pattern.permute.xlu0 0
          %1020 = vperm.xlu0 %1019, %v1010
          %v1021 = vpop.permute.xlu0 %1020
          %v1023 = vmul.f32 %v1011, %v1016
          %v1024 = vmul.f32 %v1012, %v1021
          %1027 = vrot.lane.b32.xlu0 %v1023, 32
          %v1028 = vpop.permute.xlu0 %1027
          %1029 = vrot.lane.b32.xlu0 %v1024, 32
          %v1030 = vpop.permute.xlu0 %1029
          %vm1033 = vcmask 523520
          %1034 = vst.msk [vmem:[%s322] sm:$0xff] %vm1033, %v1028
          %1035 = vst.msk [vmem:[%s322 + $0x8] sm:$0xff] %vm1033, %v1030
          %v1036 = vld [vmem:[%s789] sm:$0xff]
          %v1037 = vld [vmem:[%s789 + $0x8] sm:$0xff]
          %v1038 = vrcp.pop %v1036
          %v1039 = vrcp.pop %v1037
          %v1040 = vld [vmem:[%s806] sm:$0xff]
          %v1041 = vld [vmem:[%s806 + $0x8] sm:$0xff]
          %1043 = vset.pattern.permute.xlu0 0
          %1044 = vperm.xlu0 %1043, %v1038
          %v1045 = vpop.permute.xlu0 %1044
          %1048 = vset.pattern.permute.xlu0 0
          %1049 = vperm.xlu0 %1048, %v1039
          %v1050 = vpop.permute.xlu0 %1049
          %v1052 = vmul.f32 %v1040, %v1045
          %v1053 = vmul.f32 %v1041, %v1050
          %1056 = vrot.lane.b32.xlu0 %v1052, 64
          %v1057 = vpop.permute.xlu0 %1056
          %1058 = vrot.lane.b32.xlu0 %v1053, 64
          %v1059 = vpop.permute.xlu0 %1058
          %vm1062 = vcmask 785920
          %1063 = vst.msk [vmem:[%s322] sm:$0xff] %vm1062, %v1057
          %1064 = vst.msk [vmem:[%s322 + $0x8] sm:$0xff] %vm1062, %v1059
          %v1065 = vld [vmem:[%s948] sm:$0xff]
          %v1066 = vld [vmem:[%s948 + $0x8] sm:$0xff]
          %v1067 = vrcp.pop %v1065
          %v1068 = vrcp.pop %v1066
          %v1069 = vld [vmem:[%s965] sm:$0xff]
          %v1070 = vld [vmem:[%s965 + $0x8] sm:$0xff]
          %1072 = vset.pattern.permute.xlu0 0
          %1073 = vperm.xlu0 %1072, %v1067
          %v1074 = vpop.permute.xlu0 %1073
          %1077 = vset.pattern.permute.xlu0 0
          %1078 = vperm.xlu0 %1077, %v1068
          %v1079 = vpop.permute.xlu0 %1078
          %v1081 = vmul.f32 %v1069, %v1074
          %v1082 = vmul.f32 %v1070, %v1079
          %1085 = vrot.lane.b32.xlu0 %v1081, 96
          %v1086 = vpop.permute.xlu0 %1085
          %1087 = vrot.lane.b32.xlu0 %v1082, 96
          %v1088 = vpop.permute.xlu0 %1087
          %vm1091 = vcmask 1048320
          %1092 = vst.msk [vmem:[%s322] sm:$0xff] %vm1091, %v1086
          %1093 = vst.msk [vmem:[%s322 + $0x8] sm:$0xff] %vm1091, %v1088
        $region52: #{tpu_custom_call.1} parent=31 // pred_fallthru
          _
        %s1094 = sand.u32 %s151, 1
        %s1095 = scalar_lea.sflag [#allocation8], %s1094
        %s1096 = sand.u32 %s151, 1
        %s1097 = smul.addr %s1096, 16
        %s1098 = scalar_lea.vmem [#allocation12], %s1097
        // Predicated region
        $region53: #{tpu_custom_call.1} parent=31 // pred_check
          %p1099 = pneg %p161
        $region54: #{tpu_custom_call.1} parent=31 // pred_check_branch
          %1101 = sbr.rel (%p1099) target = $region56
        $region55: #{tpu_custom_call.1} parent=31 // pred_region
          %s1102 = smul.u32 2, %s31
          %1104 = vsyncadd %s1095, 0
          %s1105 = sadd.s32 %s30, %s1102
          %s1106 = smul.addr %s29, 2
          %s1107 = sadd.s32 %s1105, %s1106
          %s1108 = smul.addr %s1107, 8
          %s1109 = scalar_lea.hbm %s3, %s1108
          %s1110 = sshll.u32 %s1098, 4
          %s1111 = int_to_ptr.vmem [resolvable:$true] %s1110
          %s1112 = sshll.u32 %s1109, 4
          %s1113 = int_to_ptr.hbm [resolvable:$true] %s1112
          %1118 = dma.vmem_to_hbm [thread:$0]  %s1111, 256, %s1113, %s1095, 128, 128, 8
        $region56: #{tpu_custom_call.1} parent=31 // pred_fallthru
          _
      $region32: #{tpu_custom_call.1} parent=5 // pred_fallthru
        _
      %p1119 = scmp.le.s32.totalorder 2, %s18
      // Predicated region
      $region57: #{tpu_custom_call.1} parent=5 // pred_check
        %p1120 = pneg %p1119
      $region58: #{tpu_custom_call.1} parent=5 // pred_check_branch
        %1122 = sbr.rel (%p1120) target = $region60
      $region59: #{tpu_custom_call.1} parent=5 // pred_region
        %s1123 = ssub.s32 %s18, 2
        // Predicated region
        $region61: #{tpu_custom_call.1} parent=59 // pred_check
          %p1124 = pneg %p167
        $region62: #{tpu_custom_call.1} parent=59 // pred_check_branch
          %1126 = sbr.rel (%p1124) target = $region64
        $region63: #{tpu_custom_call.1} parent=59 // pred_region
          %s1127 = sand.u32 %s152, 1
          %s1128 = scalar_lea.sflag [#allocation8], %s1127
          %s1129 = sand.u32 %s152, 1
          %s1130 = smul.addr %s1129, 16
          %s1131 = scalar_lea.vmem [#allocation12], %s1130
          %1133 = dma.done %s1128, 256
        $region64: #{tpu_custom_call.1} parent=59 // pred_fallthru
          _
      $region60: #{tpu_custom_call.1} parent=5 // pred_fallthru
        _
    $region6: #{tpu_custom_call.1} parent=1 // loop_footer
      %s22 = sadd.s32 1, %s18
    $region7: #{tpu_custom_call.1} parent=1 // loop_footer_branch
      %17 = sbr.rel target = $region3
    $region8: #{tpu_custom_call.1} parent=1 // loop_exit
      _
    %1134 = vsyncpa [#allocation7], 1
    %s1135 = scalar_lea.sflag [#allocation7], 1
    %1136 = vsyncpa %s1135, 1
    %1137 = vsyncpa [#allocation10], 1
    %s1138 = scalar_lea.sflag [#allocation10], 1
    %1139 = vsyncpa %s1138, 1
    %1140 = vsyncpa [#allocation8], 1
    %s1141 = scalar_lea.sflag [#allocation8], 1
    %1142 = vsyncpa %s1141, 1

</llo_original>
